<compile_context>
chip_gen: v6e
topology: v6e:2x2x1
jax: 0.10.0
libtpu: 0.0.40
codegen_flags: <defaults>
</compile_context>

<pallas_src>
import jax
import jax.numpy as jnp
from jax.experimental import pallas as pl
from jax.experimental.pallas import tpu as pltpu

INPUT_DIM = 28 * 28          # 784
INTER_DIM = 256
LATENT_DIM = 2
HEAD_PAD = 128               # lane-dense width for the packed mu||logvar head
TB_MAX = 1024                # batch tile upper bound
TB_ALIGN = 16                # bf16 sublane packing (16 rows / vreg)


def _round_up(n, m):
    return ((n + m - 1) // m) * m


def vae_kernel(x_ref, w1_ref, b1_ref, w2_ref, b2_ref,
               w3_ref, b3_ref, w4_ref, b4_ref, eps_ref,
               recon_ref, head_ref):
    # ---- encoder: Linear(784->256) on MXU (bf16 x bf16 -> f32 acc) + ReLU
    h1 = jnp.dot(x_ref[...], w1_ref[...],
                 preferred_element_type=jnp.float32) + b1_ref[...]
    h1 = jnp.maximum(h1, 0.0)                                      # (TB, 256)

    # ---- fused mu/logvar head: one (256, 128) f32 matmul (lane-dense output);
    #      only columns 0:4 are meaningful, the rest are zero weights.
    head = jnp.dot(h1, w2_ref[...],
                   preferred_element_type=jnp.float32) + b2_ref[...]  # (TB, 128)
    mu = head[:, :LATENT_DIM]
    logvar = head[:, LATENT_DIM:2 * LATENT_DIM]

    # ---- reparameterise: eps ~ U[0,1) (torch.rand_like), z = mu + eps*exp(logvar/2)
    z = mu + eps_ref[...] * jnp.exp(logvar * 0.5)                  # (TB, 2)

    # ---- decoder layer 1: K=2 contraction done on the VPU as an outer product
    w3 = w3_ref[...]                                               # (2, 256)
    d1 = z[:, 0:1] * w3[0:1, :] + z[:, 1:2] * w3[1:2, :] + b3_ref[...]
    d1 = jnp.maximum(d1, 0.0)                                      # (TB, 256)

    # ---- decoder layer 2: Linear(256->784) on MXU + Sigmoid (f32 elementwise)
    logits = jnp.dot(d1.astype(jnp.bfloat16), w4_ref[...],
                     preferred_element_type=jnp.float32) + b4_ref[...]
    recon_ref[...] = jax.nn.sigmoid(logits)                        # (TB, 784)
    head_ref[...] = head                                           # (TB, 128)


def init_params(key):
    """nn.Linear-style init (U[-1/sqrt(fan_in), 1/sqrt(fan_in)]); weights stored (in, out)."""
    def linear(k, fan_in, fan_out):
        kw, kb = jax.random.split(k)
        bound = 1.0 / float(fan_in) ** 0.5
        w = jax.random.uniform(kw, (fan_in, fan_out), jnp.float32, -bound, bound)
        b = jax.random.uniform(kb, (1, fan_out), jnp.float32, -bound, bound)
        return w, b

    k1, k2, k3, k4 = jax.random.split(key, 4)
    w1, b1 = linear(k1, INPUT_DIM, INTER_DIM)
    w2, b2 = linear(k2, INTER_DIM, 2 * LATENT_DIM)
    w3, b3 = linear(k3, LATENT_DIM, INTER_DIM)
    w4, b4 = linear(k4, INTER_DIM, INPUT_DIM)
    return (w1, b1, w2, b2, w3, b3, w4, b4)


def prepare_params(params):
    """Kernel layout: big weights in bf16; head (w2/b2) zero-padded to 128 lanes."""
    w1, b1, w2, b2, w3, b3, w4, b4 = params
    w2p = jnp.zeros((INTER_DIM, HEAD_PAD), jnp.float32).at[:, :2 * LATENT_DIM].set(w2)
    b2p = jnp.zeros((1, HEAD_PAD), jnp.float32).at[:, :2 * LATENT_DIM].set(b2)
    return (w1.astype(jnp.bfloat16), b1,
            w2p, b2p,
            w3, b3,
            w4.astype(jnp.bfloat16), b4)


def _batch_tile(b):
    """Batch tile: multiple of 16, <= TB_MAX, and >= 2 grid steps when b > 16
    so the 'parallel' grid axis can be sharded across both v7x TensorCores."""
    tb = min(TB_MAX, _round_up(max(b, 1), TB_ALIGN))
    if b > TB_ALIGN:
        tb = min(tb, _round_up(-(-b // 2), TB_ALIGN))
    return tb


def vae_forward(x, kparams, eps):
    """x: (B, C, H, W) NCHW like the PyTorch module. Returns (recon_x, mu, logvar)."""
    b = x.shape[0]
    # Single fused reshape + cast: no feature-dim zero-pad pass over HBM.
    x2d = x.reshape(b, -1).astype(jnp.bfloat16)
    assert x2d.shape[1] == INPUT_DIM

    tb = _batch_tile(b)
    pb = _round_up(b, tb)
    if pb != b:                       # pad only the batch dim (no-op when b % tb == 0)
        x2d = jnp.pad(x2d, ((0, pb - b), (0, 0)))
        epsp = jnp.pad(eps.astype(jnp.float32), ((0, pb - b), (0, 0)))
    else:
        epsp = eps.astype(jnp.float32)

    def const_spec(shape):
        return pl.BlockSpec(shape, lambda i: (0,) * len(shape))

    in_specs = [
        pl.BlockSpec((tb, INPUT_DIM), lambda i: (i, 0)),      # x tile (bf16)
        const_spec((INPUT_DIM, INTER_DIM)),                   # w1 (bf16, resident)
        const_spec((1, INTER_DIM)),                           # b1
        const_spec((INTER_DIM, HEAD_PAD)),                    # w2 (fused head, lane-dense)
        const_spec((1, HEAD_PAD)),                            # b2
        const_spec((LATENT_DIM, INTER_DIM)),                  # w3
        const_spec((1, INTER_DIM)),                           # b3
        const_spec((INTER_DIM, INPUT_DIM)),                   # w4 (bf16, resident)
        const_spec((1, INPUT_DIM)),                           # b4
        pl.BlockSpec((tb, LATENT_DIM), lambda i: (i, 0)),     # eps tile
    ]
    out_specs = (
        pl.BlockSpec((tb, INPUT_DIM), lambda i: (i, 0)),      # recon (unpadded 784)
        pl.BlockSpec((tb, HEAD_PAD), lambda i: (i, 0)),       # packed mu||logvar (128 lanes)
    )

    # Advisory cost estimate so XLA can overlap surrounding ops with the kernel.
    weight_bytes = (INPUT_DIM * INTER_DIM * 2 + INTER_DIM * INPUT_DIM * 2
                    + INTER_DIM * HEAD_PAD * 4 + LATENT_DIM * INTER_DIM * 4
                    + (INTER_DIM + HEAD_PAD + INTER_DIM + INPUT_DIM) * 4)
    cost = pl.CostEstimate(
        flops=2 * pb * (2 * INPUT_DIM * INTER_DIM
                        + INTER_DIM * HEAD_PAD + LATENT_DIM * INTER_DIM),
        transcendentals=pb * (INPUT_DIM + LATENT_DIM),
        bytes_accessed=pb * (INPUT_DIM * 2 + INPUT_DIM * 4
                             + HEAD_PAD * 4 + LATENT_DIM * 4) + weight_bytes,
    )

    recon_flat, head = pl.pallas_call(
        vae_kernel,
        out_shape=(
            jax.ShapeDtypeStruct((pb, INPUT_DIM), jnp.float32),
            jax.ShapeDtypeStruct((pb, HEAD_PAD), jnp.float32),
        ),
        grid=(pb // tb,),
        in_specs=in_specs,
        out_specs=out_specs,
        compiler_params=pltpu.CompilerParams(
            dimension_semantics=("parallel",),
            vmem_limit_bytes=32 << 20,
        ),
        cost_estimate=cost,
    )(x2d, *kparams, epsp)

    recon = recon_flat[:b].reshape(x.shape)
    mu = head[:b, :LATENT_DIM]
    logvar = head[:b, LATENT_DIM:2 * LATENT_DIM]
    return recon, mu, logvar


def vae_reference(x, kparams, eps):
    """Pure-JAX reference using the same (bf16 / padded-head) params as the kernel."""
    w1, b1, w2p, b2p, w3, b3, w4, b4 = kparams
    b = x.shape[0]
    x2d = x.reshape(b, -1).astype(jnp.bfloat16)
    h1 = jnp.maximum(
        jnp.dot(x2d, w1, preferred_element_type=jnp.float32) + b1, 0.0)
    head = jnp.dot(h1, w2p, preferred_element_type=jnp.float32) + b2p
    mu, logvar = head[:, :LATENT_DIM], head[:, LATENT_DIM:2 * LATENT_DIM]
    z = mu + eps.astype(jnp.float32) * jnp.exp(logvar * 0.5)
    d1 = jnp.maximum(jnp.dot(z, w3, preferred_element_type=jnp.float32) + b3, 0.0)
    logits = jnp.dot(d1.astype(jnp.bfloat16), w4,
                     preferred_element_type=jnp.float32) + b4
    recon = jax.nn.sigmoid(logits).reshape(x.shape)
    return recon, mu, logvar


if __name__ == "__main__":
    key = jax.random.PRNGKey(0)
    kp, kx, ke = jax.random.split(key, 3)

    params = init_params(kp)
    kparams = prepare_params(params)

    # Small MNIST-like batch consistent with the module: (B=2, C=1, 28, 28) NCHW.
    x = jax.random.uniform(kx, (2, 1, 28, 28), dtype=jnp.float32)
    # epsilon ~ U[0,1), matching torch.rand_like(mu) in reparameterise().
    eps = jax.random.uniform(ke, (2, LATENT_DIM), dtype=jnp.float32)

    recon, mu, logvar = jax.block_until_ready(vae_forward(x, kparams, eps))

    # shape / range sanity
    assert recon.shape == x.shape
    assert mu.shape == (2, LATENT_DIM) and logvar.shape == (2, LATENT_DIM)
    assert bool(jnp.all(jnp.isfinite(recon)))
    assert bool(jnp.all((recon >= 0.0) & (recon <= 1.0)))           # sigmoid range

    # numerical check against a pure-JAX reference using identical params
    # (tolerance reflects the intentional bf16 storage of x / w1 / w4 vs an
    # all-f32 PyTorch module).
    r_ref, mu_ref, lv_ref = vae_reference(x, kparams, eps)
    assert bool(jnp.allclose(recon, r_ref, atol=2e-3, rtol=2e-3))
    assert bool(jnp.allclose(mu, mu_ref, atol=2e-3, rtol=2e-3))
    assert bool(jnp.allclose(logvar, lv_ref, atol=2e-3, rtol=2e-3))

    print("KERNEL_OK")
</pallas_src>

<mosaic_0001>
module attributes {stable_mosaic.version = 11 : i64} {
  func.func @vae_kernel(%arg0: i32, %arg1: memref<16x784xbf16, #tpu.memory_space<vmem>>, %arg2: memref<784x256xbf16, #tpu.memory_space<vmem>>, %arg3: memref<1x256xf32, #tpu.memory_space<vmem>>, %arg4: memref<256x128xf32, #tpu.memory_space<vmem>>, %arg5: memref<1x128xf32, #tpu.memory_space<vmem>>, %arg6: memref<2x256xf32, #tpu.memory_space<vmem>>, %arg7: memref<1x256xf32, #tpu.memory_space<vmem>>, %arg8: memref<256x784xbf16, #tpu.memory_space<vmem>>, %arg9: memref<1x784xf32, #tpu.memory_space<vmem>>, %arg10: memref<16x2xf32, #tpu.memory_space<vmem>>, %arg11: memref<16x784xf32, #tpu.memory_space<vmem>>, %arg12: memref<16x128xf32, #tpu.memory_space<vmem>>) attributes {dimension_semantics = [#tpu.dimension_semantics<parallel>], iteration_bounds = array<i64: 1>, scalar_prefetch = 0 : i64, scratch_operands = 0 : i64, tpu.core_type = #tpu.core_type<tc>, window_params = [{transform_indices = @transform_0, window_bounds = array<i64: 16, 784>}, {pipeline_mode = #tpu.pipeline_mode<synchronous>, transform_indices = @transform_1, window_bounds = array<i64: 784, 256>}, {pipeline_mode = #tpu.pipeline_mode<synchronous>, transform_indices = @transform_2, window_bounds = array<i64: 1, 256>}, {pipeline_mode = #tpu.pipeline_mode<synchronous>, transform_indices = @transform_3, window_bounds = array<i64: 256, 128>}, {pipeline_mode = #tpu.pipeline_mode<synchronous>, transform_indices = @transform_4, window_bounds = array<i64: 1, 128>}, {pipeline_mode = #tpu.pipeline_mode<synchronous>, transform_indices = @transform_5, window_bounds = array<i64: 2, 256>}, {pipeline_mode = #tpu.pipeline_mode<synchronous>, transform_indices = @transform_6, window_bounds = array<i64: 1, 256>}, {pipeline_mode = #tpu.pipeline_mode<synchronous>, transform_indices = @transform_7, window_bounds = array<i64: 256, 784>}, {pipeline_mode = #tpu.pipeline_mode<synchronous>, transform_indices = @transform_8, window_bounds = array<i64: 1, 784>}, {transform_indices = @transform_9, window_bounds = array<i64: 16, 2>}, {transform_indices = @transform_10, window_bounds = array<i64: 16, 784>}, {transform_indices = @transform_11, window_bounds = array<i64: 16, 128>}]} {
    %c0 = arith.constant 0 : index
    %c0_0 = arith.constant 0 : index
    %0 = vector.load %arg1[%c0, %c0_0] : memref<16x784xbf16, #tpu.memory_space<vmem>>, vector<16x784xbf16>
    %c0_1 = arith.constant 0 : index
    %c0_2 = arith.constant 0 : index
    %1 = vector.load %arg2[%c0_1, %c0_2] : memref<784x256xbf16, #tpu.memory_space<vmem>>, vector<784x256xbf16>
    %cst = arith.constant dense<0.000000e+00> : vector<16x256xf32>
    %2 = tpu.matmul %0, %1, %cst {dimension_numbers = #tpu.dot_dimension_numbers<[1], [0], [0], [1], [0, 0, 1, 1], [], []>} : vector<16x784xbf16>, vector<784x256xbf16>, vector<16x256xf32> -> vector<16x256xf32>
    %c0_3 = arith.constant 0 : index
    %c0_4 = arith.constant 0 : index
    %3 = vector.load %arg3[%c0_3, %c0_4] : memref<1x256xf32, #tpu.memory_space<vmem>>, vector<1x256xf32>
    %4 = vector.broadcast %3 : vector<1x256xf32> to vector<16x256xf32>
    %5 = arith.addf %2, %4 : vector<16x256xf32>
    %cst_5 = arith.constant 0.000000e+00 : f32
    %6 = vector.broadcast %cst_5 : f32 to vector<16x256xf32>
    %7 = arith.maximumf %5, %6 : vector<16x256xf32>
    %c0_6 = arith.constant 0 : index
    %c0_7 = arith.constant 0 : index
    %8 = vector.load %arg4[%c0_6, %c0_7] : memref<256x128xf32, #tpu.memory_space<vmem>>, vector<256x128xf32>
    %cst_8 = arith.constant dense<0.000000e+00> : vector<16x128xf32>
    %9 = tpu.matmul %7, %8, %cst_8 {dimension_numbers = #tpu.dot_dimension_numbers<[1], [0], [0], [1], [0, 0, 1, 1], [], []>} : vector<16x256xf32>, vector<256x128xf32>, vector<16x128xf32> -> vector<16x128xf32>
    %c0_9 = arith.constant 0 : index
    %c0_10 = arith.constant 0 : index
    %10 = vector.load %arg5[%c0_9, %c0_10] : memref<1x128xf32, #tpu.memory_space<vmem>>, vector<1x128xf32>
    %11 = vector.broadcast %10 : vector<1x128xf32> to vector<16x128xf32>
    %12 = arith.addf %9, %11 : vector<16x128xf32>
    %13 = vector.extract_strided_slice %12 {offsets = [0, 0], sizes = [16, 2], strides = [1, 1]} : vector<16x128xf32> to vector<16x2xf32>
    %14 = vector.extract_strided_slice %12 {offsets = [0, 2], sizes = [16, 2], strides = [1, 1]} : vector<16x128xf32> to vector<16x2xf32>
    %c0_11 = arith.constant 0 : index
    %c0_12 = arith.constant 0 : index
    %15 = vector.load %arg10[%c0_11, %c0_12] : memref<16x2xf32, #tpu.memory_space<vmem>>, vector<16x2xf32>
    %cst_13 = arith.constant 5.000000e-01 : f32
    %16 = vector.broadcast %cst_13 : f32 to vector<16x2xf32>
    %17 = arith.mulf %14, %16 : vector<16x2xf32>
    %18 = math.exp %17 : vector<16x2xf32>
    %19 = arith.mulf %15, %18 : vector<16x2xf32>
    %20 = arith.addf %13, %19 : vector<16x2xf32>
    %c0_14 = arith.constant 0 : index
    %c0_15 = arith.constant 0 : index
    %21 = vector.load %arg6[%c0_14, %c0_15] : memref<2x256xf32, #tpu.memory_space<vmem>>, vector<2x256xf32>
    %22 = vector.extract_strided_slice %20 {offsets = [0, 0], sizes = [16, 1], strides = [1, 1]} : vector<16x2xf32> to vector<16x1xf32>
    %23 = vector.extract_strided_slice %21 {offsets = [0, 0], sizes = [1, 256], strides = [1, 1]} : vector<2x256xf32> to vector<1x256xf32>
    %24 = vector.broadcast %22 : vector<16x1xf32> to vector<16x256xf32>
    %25 = vector.broadcast %23 : vector<1x256xf32> to vector<16x256xf32>
    %26 = arith.mulf %24, %25 : vector<16x256xf32>
    %27 = vector.extract_strided_slice %20 {offsets = [0, 1], sizes = [16, 1], strides = [1, 1]} : vector<16x2xf32> to vector<16x1xf32>
    %28 = vector.extract_strided_slice %21 {offsets = [1, 0], sizes = [1, 256], strides = [1, 1]} : vector<2x256xf32> to vector<1x256xf32>
    %29 = vector.broadcast %27 : vector<16x1xf32> to vector<16x256xf32>
    %30 = vector.broadcast %28 : vector<1x256xf32> to vector<16x256xf32>
    %31 = arith.mulf %29, %30 : vector<16x256xf32>
    %32 = arith.addf %26, %31 : vector<16x256xf32>
    %c0_16 = arith.constant 0 : index
    %c0_17 = arith.constant 0 : index
    %33 = vector.load %arg7[%c0_16, %c0_17] : memref<1x256xf32, #tpu.memory_space<vmem>>, vector<1x256xf32>
    %34 = vector.broadcast %33 : vector<1x256xf32> to vector<16x256xf32>
    %35 = arith.addf %32, %34 : vector<16x256xf32>
    %cst_18 = arith.constant 0.000000e+00 : f32
    %36 = vector.broadcast %cst_18 : f32 to vector<16x256xf32>
    %37 = arith.maximumf %35, %36 : vector<16x256xf32>
    %38 = arith.truncf %37 : vector<16x256xf32> to vector<16x256xbf16>
    %c0_19 = arith.constant 0 : index
    %c0_20 = arith.constant 0 : index
    %39 = vector.load %arg8[%c0_19, %c0_20] : memref<256x784xbf16, #tpu.memory_space<vmem>>, vector<256x784xbf16>
    %cst_21 = arith.constant dense<0.000000e+00> : vector<16x784xf32>
    %40 = tpu.matmul %38, %39, %cst_21 {dimension_numbers = #tpu.dot_dimension_numbers<[1], [0], [0], [1], [0, 0, 1, 1], [], []>} : vector<16x256xbf16>, vector<256x784xbf16>, vector<16x784xf32> -> vector<16x784xf32>
    %c0_22 = arith.constant 0 : index
    %c0_23 = arith.constant 0 : index
    %41 = vector.load %arg9[%c0_22, %c0_23] : memref<1x784xf32, #tpu.memory_space<vmem>>, vector<1x784xf32>
    %42 = vector.broadcast %41 : vector<1x784xf32> to vector<16x784xf32>
    %43 = arith.addf %40, %42 : vector<16x784xf32>
    %44 = arith.negf %43 : vector<16x784xf32>
    %45 = math.exp %44 : vector<16x784xf32>
    %cst_24 = arith.constant 1.000000e+00 : f32
    %46 = vector.broadcast %cst_24 : f32 to vector<16x784xf32>
    %47 = arith.addf %46, %45 : vector<16x784xf32>
    %48 = arith.divf %46, %47 : vector<16x784xf32>
    %c0_25 = arith.constant 0 : index
    %c0_26 = arith.constant 0 : index
    %49 = vector.load %arg11[%c0_25, %c0_26] : memref<16x784xf32, #tpu.memory_space<vmem>>, vector<16x784xf32>
    tpu.vector_store %arg11[%c0_25, %c0_26], %48 {strides = array<i32>} : memref<16x784xf32, #tpu.memory_space<vmem>>, vector<16x784xf32>,
    %c0_27 = arith.constant 0 : index
    %c0_28 = arith.constant 0 : index
    %50 = vector.load %arg12[%c0_27, %c0_28] : memref<16x128xf32, #tpu.memory_space<vmem>>, vector<16x128xf32>
    tpu.vector_store %arg12[%c0_27, %c0_28], %12 {strides = array<i32>} : memref<16x128xf32, #tpu.memory_space<vmem>>, vector<16x128xf32>,
    return
  }
  func.func @transform_0(%arg0: i32) -> (i32, i32) {
    %c0_i32 = arith.constant 0 : i32
    %c0_i32_0 = arith.constant 0 : i32
    return %arg0, %c0_i32 : i32, i32
  }
  func.func @transform_1(%arg0: i32) -> (i32, i32) {
    %c0_i32 = arith.constant 0 : i32
    %c0_i32_0 = arith.constant 0 : i32
    %c0_i32_1 = arith.constant 0 : i32
    return %c0_i32, %c0_i32_0 : i32, i32
  }
  func.func @transform_2(%arg0: i32) -> (i32, i32) {
    %c0_i32 = arith.constant 0 : i32
    %c0_i32_0 = arith.constant 0 : i32
    %c0_i32_1 = arith.constant 0 : i32
    return %c0_i32, %c0_i32_0 : i32, i32
  }
  func.func @transform_3(%arg0: i32) -> (i32, i32) {
    %c0_i32 = arith.constant 0 : i32
    %c0_i32_0 = arith.constant 0 : i32
    %c0_i32_1 = arith.constant 0 : i32
    return %c0_i32, %c0_i32_0 : i32, i32
  }
  func.func @transform_4(%arg0: i32) -> (i32, i32) {
    %c0_i32 = arith.constant 0 : i32
    %c0_i32_0 = arith.constant 0 : i32
    %c0_i32_1 = arith.constant 0 : i32
    return %c0_i32, %c0_i32_0 : i32, i32
  }
  func.func @transform_5(%arg0: i32) -> (i32, i32) {
    %c0_i32 = arith.constant 0 : i32
    %c0_i32_0 = arith.constant 0 : i32
    %c0_i32_1 = arith.constant 0 : i32
    return %c0_i32, %c0_i32_0 : i32, i32
  }
  func.func @transform_6(%arg0: i32) -> (i32, i32) {
    %c0_i32 = arith.constant 0 : i32
    %c0_i32_0 = arith.constant 0 : i32
    %c0_i32_1 = arith.constant 0 : i32
    return %c0_i32, %c0_i32_0 : i32, i32
  }
  func.func @transform_7(%arg0: i32) -> (i32, i32) {
    %c0_i32 = arith.constant 0 : i32
    %c0_i32_0 = arith.constant 0 : i32
    %c0_i32_1 = arith.constant 0 : i32
    return %c0_i32, %c0_i32_0 : i32, i32
  }
  func.func @transform_8(%arg0: i32) -> (i32, i32) {
    %c0_i32 = arith.constant 0 : i32
    %c0_i32_0 = arith.constant 0 : i32
    %c0_i32_1 = arith.constant 0 : i32
    return %c0_i32, %c0_i32_0 : i32, i32
  }
  func.func @transform_9(%arg0: i32) -> (i32, i32) {
    %c0_i32 = arith.constant 0 : i32
    %c0_i32_0 = arith.constant 0 : i32
    return %arg0, %c0_i32 : i32, i32
  }
  func.func @transform_10(%arg0: i32) -> (i32, i32) {
    %c0_i32 = arith.constant 0 : i32
    %c0_i32_0 = arith.constant 0 : i32
    return %arg0, %c0_i32 : i32, i32
  }
  func.func @transform_11(%arg0: i32) -> (i32, i32) {
    %c0_i32 = arith.constant 0 : i32
    %c0_i32_0 = arith.constant 0 : i32
    return %arg0, %c0_i32 : i32, i32
  }
}

</mosaic_0001>

<llo_original>
// kernel: tpu_custom_call.1
$region0: #{tpu_custom_call.1}
  #allocation0 [shape = 'u32[]', space=smem, size = 0x4, offset = 0x4, fixed_abs, tag = 'smem constant byte address 0x4 - core index']
  #allocation1 [shape = 'u32[144,128]{1,0:T(1,128)}', space=vmem, size = 0x12000, scoped, tag = 'internal scratch']
  %s0 = inlined_call_operand.vmem [shape: bf16[16,784], index: 0, kind: input, shape index: {}]
  %s1 = inlined_call_operand.vmem [shape: bf16[784,256], index: 1, kind: input, shape index: {}]
  %s2 = inlined_call_operand.vmem [shape: f32[1,256], index: 2, kind: input, shape index: {}]
  %s3 = inlined_call_operand.vmem [shape: f32[256,128], index: 3, kind: input, shape index: {}]
  %s4 = inlined_call_operand.vmem [shape: f32[1,128], index: 4, kind: input, shape index: {}]
  %s5 = inlined_call_operand.vmem [shape: f32[2,256], index: 5, kind: input, shape index: {}]
  %s6 = inlined_call_operand.vmem [shape: f32[1,256], index: 6, kind: input, shape index: {}]
  %s7 = inlined_call_operand.vmem [shape: bf16[256,784], index: 7, kind: input, shape index: {}]
  %s8 = inlined_call_operand.vmem [shape: f32[1,784], index: 8, kind: input, shape index: {}]
  %s9 = inlined_call_operand.vmem [shape: f32[16,2], index: 9, kind: input, shape index: {}]
  %s10 = inlined_call_operand.hbm [shape: f32[16,784], index: 10, kind: output, shape index: {0}]
  %s11 = inlined_call_operand.hbm [shape: f32[16,128], index: 11, kind: output, shape index: {1}]
  %12 = xla_tuple %s10, %s11
  %s13 = sld [smem:[#allocation0]]
  $region58: #{tpu_custom_call.1} parent=0
    _
  %s15 = ssub.s32 1, %s13
  %s16 = scalar_select 0, %s15, %s13
  $region1: #{tpu_custom_call.1} parent=0
    #allocation2 [shape = 'u8[57344]{0}', space=vmem, size = 0xe000, scoped, tag = 'output window, operand 0, single buffered']
    #allocation3 [shape = 's32[1]{0}', space=sflag, size = 0x4, scoped, tag = 'scoped memory for tpu_custom_call.1']
    #allocation4 [shape = 'u8[8192]{0}', space=vmem, size = 0x2000, scoped, tag = 'output window, operand 1, single buffered']
    #allocation5 [shape = 's32[1]{0}', space=sflag, size = 0x4, scoped, tag = 'scoped memory for tpu_custom_call.1']
    %17 = vsyncpa [#allocation3], 0
    %18 = vsyncpa [#allocation5], 0
    // Predicated region
    $region2: #{tpu_custom_call.1} parent=1 // pred_check
      _
    $region3: #{tpu_custom_call.1} parent=1 // pred_check_branch
      %20 = sbr.rel (0) target = $region5
    $region4: #{tpu_custom_call.1} parent=1 // pred_region
      _
    $region5: #{tpu_custom_call.1} parent=1 // pred_fallthru
      _
    // Predicated region
    $region6: #{tpu_custom_call.1} parent=1 // pred_check
      _
    $region7: #{tpu_custom_call.1} parent=1 // pred_check_branch
      %22 = sbr.rel (0) target = $region9
    $region8: #{tpu_custom_call.1} parent=1 // pred_region
      _
    $region9: #{tpu_custom_call.1} parent=1 // pred_fallthru
      _
    // Predicated region
    $region10: #{tpu_custom_call.1} parent=1 // pred_check
      _
    $region11: #{tpu_custom_call.1} parent=1 // pred_check_branch
      %24 = sbr.rel (0) target = $region13
    $region12: #{tpu_custom_call.1} parent=1 // pred_region
      _
    $region13: #{tpu_custom_call.1} parent=1 // pred_fallthru
      _
    // Predicated region
    $region14: #{tpu_custom_call.1} parent=1 // pred_check
      _
    $region15: #{tpu_custom_call.1} parent=1 // pred_check_branch
      %26 = sbr.rel (0) target = $region17
    $region16: #{tpu_custom_call.1} parent=1 // pred_region
      _
    $region17: #{tpu_custom_call.1} parent=1 // pred_fallthru
      _
    // Predicated region
    $region18: #{tpu_custom_call.1} parent=1 // pred_check
      _
    $region19: #{tpu_custom_call.1} parent=1 // pred_check_branch
      %28 = sbr.rel (0) target = $region21
    $region20: #{tpu_custom_call.1} parent=1 // pred_region
      _
    $region21: #{tpu_custom_call.1} parent=1 // pred_fallthru
      _
    // Predicated region
    $region22: #{tpu_custom_call.1} parent=1 // pred_check
      _
    $region23: #{tpu_custom_call.1} parent=1 // pred_check_branch
      %30 = sbr.rel (0) target = $region25
    $region24: #{tpu_custom_call.1} parent=1 // pred_region
      _
    $region25: #{tpu_custom_call.1} parent=1 // pred_fallthru
      _
    // Predicated region
    $region26: #{tpu_custom_call.1} parent=1 // pred_check
      _
    $region27: #{tpu_custom_call.1} parent=1 // pred_check_branch
      %32 = sbr.rel (0) target = $region29
    $region28: #{tpu_custom_call.1} parent=1 // pred_region
      _
    $region29: #{tpu_custom_call.1} parent=1 // pred_fallthru
      _
    // Predicated region
    $region30: #{tpu_custom_call.1} parent=1 // pred_check
      _
    $region31: #{tpu_custom_call.1} parent=1 // pred_check_branch
      %34 = sbr.rel (0) target = $region33
    $region32: #{tpu_custom_call.1} parent=1 // pred_region
      _
    $region33: #{tpu_custom_call.1} parent=1 // pred_fallthru
      _
    // Predicated region
    $region34: #{tpu_custom_call.1} parent=1 // pred_check
      _
    $region35: #{tpu_custom_call.1} parent=1 // pred_check_branch
      %36 = sbr.rel (0) target = $region37
    $region36: #{tpu_custom_call.1} parent=1 // pred_region
      _
    $region37: #{tpu_custom_call.1} parent=1 // pred_fallthru
      _
    // Predicated region
    $region38: #{tpu_custom_call.1} parent=1 // pred_check
      _
    $region39: #{tpu_custom_call.1} parent=1 // pred_check_branch
      %38 = sbr.rel (0) target = $region41
    $region40: #{tpu_custom_call.1} parent=1 // pred_region
      _
    $region41: #{tpu_custom_call.1} parent=1 // pred_fallthru
      _
    %v40 = vld [vmem:[%s0] sm:$0xff]
    %v41 = vld [vmem:[%s0 + $0x8] sm:$0xff]
    %v42 = vld [vmem:[%s0 + $0x10] sm:$0xff]
    %v43 = vld [vmem:[%s0 + $0x18] sm:$0xf]
    %v44 = vld [vmem:[%s0 + $0x1c] sm:$0xff]
    %v45 = vld [vmem:[%s0 + $0x24] sm:$0xff]
    %v46 = vld [vmem:[%s0 + $0x2c] sm:$0xff]
    %v47 = vld [vmem:[%s0 + $0x34] sm:$0xf]
    %v48 = vld [vmem:[%s1] sm:$0xff]
    %v49 = vld [vmem:[%s1 + $0x8] sm:$0xff]
    %v50 = vld [vmem:[%s1 + $0x10] sm:$0xff]
    %v51 = vld [vmem:[%s1 + $0x18] sm:$0xff]
    %v52 = vld [vmem:[%s1 + $0x20] sm:$0xff]
    %v53 = vld [vmem:[%s1 + $0x28] sm:$0xff]
    %v54 = vld [vmem:[%s1 + $0x30] sm:$0xff]
    %v55 = vld [vmem:[%s1 + $0x38] sm:$0xff]
    %v56 = vld [vmem:[%s1 + $0x40] sm:$0xff]
    %v57 = vld [vmem:[%s1 + $0x48] sm:$0xff]
    %v58 = vld [vmem:[%s1 + $0x50] sm:$0xff]
    %v59 = vld [vmem:[%s1 + $0x58] sm:$0xff]
    %v60 = vld [vmem:[%s1 + $0x60] sm:$0xff]
    %v61 = vld [vmem:[%s1 + $0x68] sm:$0xff]
    %v62 = vld [vmem:[%s1 + $0x70] sm:$0xff]
    %v63 = vld [vmem:[%s1 + $0x78] sm:$0xff]
    %v64 = vld [vmem:[%s1 + $0x80] sm:$0xff]
    %v65 = vld [vmem:[%s1 + $0x88] sm:$0xff]
    %v66 = vld [vmem:[%s1 + $0x90] sm:$0xff]
    %v67 = vld [vmem:[%s1 + $0x98] sm:$0xff]
    %v68 = vld [vmem:[%s1 + $0xa0] sm:$0xff]
    %v69 = vld [vmem:[%s1 + $0xa8] sm:$0xff]
    %v70 = vld [vmem:[%s1 + $0xb0] sm:$0xff]
    %v71 = vld [vmem:[%s1 + $0xb8] sm:$0xff]
    %v72 = vld [vmem:[%s1 + $0xc0] sm:$0xff]
    %v73 = vld [vmem:[%s1 + $0xc8] sm:$0xff]
    %v74 = vld [vmem:[%s1 + $0xd0] sm:$0xff]
    %v75 = vld [vmem:[%s1 + $0xd8] sm:$0xff]
    %v76 = vld [vmem:[%s1 + $0xe0] sm:$0xff]
    %v77 = vld [vmem:[%s1 + $0xe8] sm:$0xff]
    %v78 = vld [vmem:[%s1 + $0xf0] sm:$0xff]
    %v79 = vld [vmem:[%s1 + $0xf8] sm:$0xff]
    %v80 = vld [vmem:[%s1 + $0x100] sm:$0xff]
    %v81 = vld [vmem:[%s1 + $0x108] sm:$0xff]
    %v82 = vld [vmem:[%s1 + $0x110] sm:$0xff]
    %v83 = vld [vmem:[%s1 + $0x118] sm:$0xff]
    %v84 = vld [vmem:[%s1 + $0x120] sm:$0xff]
    %v85 = vld [vmem:[%s1 + $0x128] sm:$0xff]
    %v86 = vld [vmem:[%s1 + $0x130] sm:$0xff]
    %v87 = vld [vmem:[%s1 + $0x138] sm:$0xff]
    %v88 = vld [vmem:[%s1 + $0x140] sm:$0xff]
    %v89 = vld [vmem:[%s1 + $0x148] sm:$0xff]
    %v90 = vld [vmem:[%s1 + $0x150] sm:$0xff]
    %v91 = vld [vmem:[%s1 + $0x158] sm:$0xff]
    %v92 = vld [vmem:[%s1 + $0x160] sm:$0xff]
    %v93 = vld [vmem:[%s1 + $0x168] sm:$0xff]
    %v94 = vld [vmem:[%s1 + $0x170] sm:$0xff]
    %v95 = vld [vmem:[%s1 + $0x178] sm:$0xff]
    %v96 = vld [vmem:[%s1 + $0x180] sm:$0xff]
    %v97 = vld [vmem:[%s1 + $0x188] sm:$0xff]
    %v98 = vld [vmem:[%s1 + $0x190] sm:$0xff]
    %v99 = vld [vmem:[%s1 + $0x198] sm:$0xff]
    %v100 = vld [vmem:[%s1 + $0x1a0] sm:$0xff]
    %v101 = vld [vmem:[%s1 + $0x1a8] sm:$0xff]
    %v102 = vld [vmem:[%s1 + $0x1b0] sm:$0xff]
    %v103 = vld [vmem:[%s1 + $0x1b8] sm:$0xff]
    %v104 = vld [vmem:[%s1 + $0x1c0] sm:$0xff]
    %v105 = vld [vmem:[%s1 + $0x1c8] sm:$0xff]
    %v106 = vld [vmem:[%s1 + $0x1d0] sm:$0xff]
    %v107 = vld [vmem:[%s1 + $0x1d8] sm:$0xff]
    %v108 = vld [vmem:[%s1 + $0x1e0] sm:$0xff]
    %v109 = vld [vmem:[%s1 + $0x1e8] sm:$0xff]
    %v110 = vld [vmem:[%s1 + $0x1f0] sm:$0xff]
    %v111 = vld [vmem:[%s1 + $0x1f8] sm:$0xff]
    %v112 = vld [vmem:[%s1 + $0x200] sm:$0xff]
    %v113 = vld [vmem:[%s1 + $0x208] sm:$0xff]
    %v114 = vld [vmem:[%s1 + $0x210] sm:$0xff]
    %v115 = vld [vmem:[%s1 + $0x218] sm:$0xff]
    %v116 = vld [vmem:[%s1 + $0x220] sm:$0xff]
    %v117 = vld [vmem:[%s1 + $0x228] sm:$0xff]
    %v118 = vld [vmem:[%s1 + $0x230] sm:$0xff]
    %v119 = vld [vmem:[%s1 + $0x238] sm:$0xff]
    %v120 = vld [vmem:[%s1 + $0x240] sm:$0xff]
    %v121 = vld [vmem:[%s1 + $0x248] sm:$0xff]
    %v122 = vld [vmem:[%s1 + $0x250] sm:$0xff]
    %v123 = vld [vmem:[%s1 + $0x258] sm:$0xff]
    %v124 = vld [vmem:[%s1 + $0x260] sm:$0xff]
    %v125 = vld [vmem:[%s1 + $0x268] sm:$0xff]
    %v126 = vld [vmem:[%s1 + $0x270] sm:$0xff]
    %v127 = vld [vmem:[%s1 + $0x278] sm:$0xff]
    %v128 = vld [vmem:[%s1 + $0x280] sm:$0xff]
    %v129 = vld [vmem:[%s1 + $0x288] sm:$0xff]
    %v130 = vld [vmem:[%s1 + $0x290] sm:$0xff]
    %v131 = vld [vmem:[%s1 + $0x298] sm:$0xff]
    %v132 = vld [vmem:[%s1 + $0x2a0] sm:$0xff]
    %v133 = vld [vmem:[%s1 + $0x2a8] sm:$0xff]
    %v134 = vld [vmem:[%s1 + $0x2b0] sm:$0xff]
    %v135 = vld [vmem:[%s1 + $0x2b8] sm:$0xff]
    %v136 = vld [vmem:[%s1 + $0x2c0] sm:$0xff]
    %v137 = vld [vmem:[%s1 + $0x2c8] sm:$0xff]
    %v138 = vld [vmem:[%s1 + $0x2d0] sm:$0xff]
    %v139 = vld [vmem:[%s1 + $0x2d8] sm:$0xff]
    %v140 = vld [vmem:[%s1 + $0x2e0] sm:$0xff]
    %v141 = vld [vmem:[%s1 + $0x2e8] sm:$0xff]
    %v142 = vld [vmem:[%s1 + $0x2f0] sm:$0xff]
    %v143 = vld [vmem:[%s1 + $0x2f8] sm:$0xff]
    %v144 = vld [vmem:[%s1 + $0x300] sm:$0xff]
    %v145 = vld [vmem:[%s1 + $0x308] sm:$0xff]
    %v146 = vld [vmem:[%s2] sm:$0x3]
    %v148 = vlaneseq
    %v149 = vshrl.u32 %v148, 7
    %v150 = vsub.s32 0, %v149
    %v151 = vrot.slane %v146, %v150
    %v152 = vlaneseq
    %v153 = vshrl.u32 %v152, 7
    %v154 = vsub.s32 1, %v153
    %v155 = vrot.slane %v146, %v154
    %v166 = vunpack.c.l.b16 %v40
    %v167 = vunpack.c.h.b16 %v40
    %v168 = vunpack.c.l.b16 %v41
    %v169 = vunpack.c.h.b16 %v41
    %v170 = vunpack.c.l.b16 %v42
    %v171 = vunpack.c.h.b16 %v42
    %v172 = vunpack.c.l.b16 %v43
    %v173 = vunpack.c.l.b16 %v44
    %v174 = vunpack.c.h.b16 %v44
    %v175 = vunpack.c.l.b16 %v45
    %v176 = vunpack.c.h.b16 %v45
    %v177 = vunpack.c.l.b16 %v46
    %v178 = vunpack.c.h.b16 %v46
    %v179 = vunpack.c.l.b16 %v47
    %v180 = vpack.c.b16 %v173, %v166
    %v181 = vpack.c.b16 %v174, %v167
    %v182 = vpack.c.b16 %v175, %v168
    %v183 = vpack.c.b16 %v176, %v169
    %v184 = vpack.c.b16 %v177, %v170
    %v185 = vpack.c.b16 %v178, %v171
    %v186 = vpack.c.b16 %v179, %v172
    %v291 = vunpack.c.l.b16 %v48
    %v292 = vunpack.c.h.b16 %v48
    %v293 = vunpack.c.l.b16 %v49
    %v294 = vunpack.c.h.b16 %v49
    %v295 = vunpack.c.l.b16 %v50
    %v296 = vunpack.c.h.b16 %v50
    %v297 = vunpack.c.l.b16 %v51
    %v298 = vunpack.c.h.b16 %v51
    %v299 = vunpack.c.l.b16 %v52
    %v300 = vunpack.c.h.b16 %v52
    %v301 = vunpack.c.l.b16 %v53
    %v302 = vunpack.c.h.b16 %v53
    %v303 = vunpack.c.l.b16 %v54
    %v304 = vunpack.c.h.b16 %v54
    %v305 = vunpack.c.l.b16 %v55
    %v306 = vunpack.c.h.b16 %v55
    %v307 = vunpack.c.l.b16 %v56
    %v308 = vunpack.c.h.b16 %v56
    %v309 = vunpack.c.l.b16 %v57
    %v310 = vunpack.c.h.b16 %v57
    %v311 = vunpack.c.l.b16 %v58
    %v312 = vunpack.c.h.b16 %v58
    %v313 = vunpack.c.l.b16 %v59
    %v314 = vunpack.c.h.b16 %v59
    %v315 = vunpack.c.l.b16 %v60
    %v316 = vunpack.c.h.b16 %v60
    %v317 = vunpack.c.l.b16 %v61
    %v318 = vunpack.c.h.b16 %v61
    %v319 = vunpack.c.l.b16 %v62
    %v320 = vunpack.c.h.b16 %v62
    %v321 = vunpack.c.l.b16 %v63
    %v322 = vunpack.c.h.b16 %v63
    %v323 = vunpack.c.l.b16 %v64
    %v324 = vunpack.c.h.b16 %v64
    %v325 = vunpack.c.l.b16 %v65
    %v326 = vunpack.c.h.b16 %v65
    %v327 = vunpack.c.l.b16 %v66
    %v328 = vunpack.c.h.b16 %v66
    %v329 = vunpack.c.l.b16 %v67
    %v330 = vunpack.c.h.b16 %v67
    %v331 = vunpack.c.l.b16 %v68
    %v332 = vunpack.c.h.b16 %v68
    %v333 = vunpack.c.l.b16 %v69
    %v334 = vunpack.c.h.b16 %v69
    %v335 = vunpack.c.l.b16 %v70
    %v336 = vunpack.c.h.b16 %v70
    %v337 = vunpack.c.l.b16 %v71
    %v338 = vunpack.c.h.b16 %v71
    %v339 = vunpack.c.l.b16 %v72
    %v340 = vunpack.c.h.b16 %v72
    %v341 = vunpack.c.l.b16 %v73
    %v342 = vunpack.c.h.b16 %v73
    %v343 = vunpack.c.l.b16 %v74
    %v344 = vunpack.c.h.b16 %v74
    %v345 = vunpack.c.l.b16 %v75
    %v346 = vunpack.c.h.b16 %v75
    %v347 = vunpack.c.l.b16 %v76
    %v348 = vunpack.c.h.b16 %v76
    %v349 = vunpack.c.l.b16 %v77
    %v350 = vunpack.c.h.b16 %v77
    %v351 = vunpack.c.l.b16 %v78
    %v352 = vunpack.c.h.b16 %v78
    %v353 = vunpack.c.l.b16 %v79
    %v354 = vunpack.c.h.b16 %v79
    %v355 = vunpack.c.l.b16 %v80
    %v356 = vunpack.c.h.b16 %v80
    %v357 = vunpack.c.l.b16 %v81
    %v358 = vunpack.c.h.b16 %v81
    %v359 = vunpack.c.l.b16 %v82
    %v360 = vunpack.c.h.b16 %v82
    %v361 = vunpack.c.l.b16 %v83
    %v362 = vunpack.c.h.b16 %v83
    %v363 = vunpack.c.l.b16 %v84
    %v364 = vunpack.c.h.b16 %v84
    %v365 = vunpack.c.l.b16 %v85
    %v366 = vunpack.c.h.b16 %v85
    %v367 = vunpack.c.l.b16 %v86
    %v368 = vunpack.c.h.b16 %v86
    %v369 = vunpack.c.l.b16 %v87
    %v370 = vunpack.c.h.b16 %v87
    %v371 = vunpack.c.l.b16 %v88
    %v372 = vunpack.c.h.b16 %v88
    %v373 = vunpack.c.l.b16 %v89
    %v374 = vunpack.c.h.b16 %v89
    %v375 = vunpack.c.l.b16 %v90
    %v376 = vunpack.c.h.b16 %v90
    %v377 = vunpack.c.l.b16 %v91
    %v378 = vunpack.c.h.b16 %v91
    %v379 = vunpack.c.l.b16 %v92
    %v380 = vunpack.c.h.b16 %v92
    %v381 = vunpack.c.l.b16 %v93
    %v382 = vunpack.c.h.b16 %v93
    %v383 = vunpack.c.l.b16 %v94
    %v384 = vunpack.c.h.b16 %v94
    %v385 = vunpack.c.l.b16 %v95
    %v386 = vunpack.c.h.b16 %v95
    %v387 = vunpack.c.l.b16 %v96
    %v388 = vunpack.c.h.b16 %v96
    %v389 = vunpack.c.l.b16 %v97
    %v390 = vunpack.c.h.b16 %v97
    %v391 = vunpack.c.l.b16 %v98
    %v392 = vunpack.c.h.b16 %v98
    %v393 = vunpack.c.l.b16 %v99
    %v394 = vunpack.c.h.b16 %v99
    %v395 = vunpack.c.l.b16 %v100
    %v396 = vunpack.c.h.b16 %v100
    %v397 = vunpack.c.l.b16 %v101
    %v398 = vunpack.c.h.b16 %v101
    %v399 = vunpack.c.l.b16 %v102
    %v400 = vunpack.c.h.b16 %v102
    %v401 = vunpack.c.l.b16 %v103
    %v402 = vunpack.c.h.b16 %v103
    %v403 = vunpack.c.l.b16 %v104
    %v404 = vunpack.c.h.b16 %v104
    %v405 = vunpack.c.l.b16 %v105
    %v406 = vunpack.c.h.b16 %v105
    %v407 = vunpack.c.l.b16 %v106
    %v408 = vunpack.c.h.b16 %v106
    %v409 = vunpack.c.l.b16 %v107
    %v410 = vunpack.c.h.b16 %v107
    %v411 = vunpack.c.l.b16 %v108
    %v412 = vunpack.c.h.b16 %v108
    %v413 = vunpack.c.l.b16 %v109
    %v414 = vunpack.c.h.b16 %v109
    %v415 = vunpack.c.l.b16 %v110
    %v416 = vunpack.c.h.b16 %v110
    %v417 = vunpack.c.l.b16 %v111
    %v418 = vunpack.c.h.b16 %v111
    %v419 = vunpack.c.l.b16 %v112
    %v420 = vunpack.c.h.b16 %v112
    %v421 = vunpack.c.l.b16 %v113
    %v422 = vunpack.c.h.b16 %v113
    %v423 = vunpack.c.l.b16 %v114
    %v424 = vunpack.c.h.b16 %v114
    %v425 = vunpack.c.l.b16 %v115
    %v426 = vunpack.c.h.b16 %v115
    %v427 = vunpack.c.l.b16 %v116
    %v428 = vunpack.c.h.b16 %v116
    %v429 = vunpack.c.l.b16 %v117
    %v430 = vunpack.c.h.b16 %v117
    %v431 = vunpack.c.l.b16 %v118
    %v432 = vunpack.c.h.b16 %v118
    %v433 = vunpack.c.l.b16 %v119
    %v434 = vunpack.c.h.b16 %v119
    %v435 = vunpack.c.l.b16 %v120
    %v436 = vunpack.c.h.b16 %v120
    %v437 = vunpack.c.l.b16 %v121
    %v438 = vunpack.c.h.b16 %v121
    %v439 = vunpack.c.l.b16 %v122
    %v440 = vunpack.c.h.b16 %v122
    %v441 = vunpack.c.l.b16 %v123
    %v442 = vunpack.c.h.b16 %v123
    %v443 = vunpack.c.l.b16 %v124
    %v444 = vunpack.c.h.b16 %v124
    %v445 = vunpack.c.l.b16 %v125
    %v446 = vunpack.c.h.b16 %v125
    %v447 = vunpack.c.l.b16 %v126
    %v448 = vunpack.c.h.b16 %v126
    %v449 = vunpack.c.l.b16 %v127
    %v450 = vunpack.c.h.b16 %v127
    %v451 = vunpack.c.l.b16 %v128
    %v452 = vunpack.c.h.b16 %v128
    %v453 = vunpack.c.l.b16 %v129
    %v454 = vunpack.c.h.b16 %v129
    %v455 = vunpack.c.l.b16 %v130
    %v456 = vunpack.c.h.b16 %v130
    %v457 = vunpack.c.l.b16 %v131
    %v458 = vunpack.c.h.b16 %v131
    %v459 = vunpack.c.l.b16 %v132
    %v460 = vunpack.c.h.b16 %v132
    %v461 = vunpack.c.l.b16 %v133
    %v462 = vunpack.c.h.b16 %v133
    %v463 = vunpack.c.l.b16 %v134
    %v464 = vunpack.c.h.b16 %v134
    %v465 = vunpack.c.l.b16 %v135
    %v466 = vunpack.c.h.b16 %v135
    %v467 = vunpack.c.l.b16 %v136
    %v468 = vunpack.c.h.b16 %v136
    %v469 = vunpack.c.l.b16 %v137
    %v470 = vunpack.c.h.b16 %v137
    %v471 = vunpack.c.l.b16 %v138
    %v472 = vunpack.c.h.b16 %v138
    %v473 = vunpack.c.l.b16 %v139
    %v474 = vunpack.c.h.b16 %v139
    %v475 = vunpack.c.l.b16 %v140
    %v476 = vunpack.c.h.b16 %v140
    %v477 = vunpack.c.l.b16 %v141
    %v478 = vunpack.c.h.b16 %v141
    %v479 = vunpack.c.l.b16 %v142
    %v480 = vunpack.c.h.b16 %v142
    %v481 = vunpack.c.l.b16 %v143
    %v482 = vunpack.c.h.b16 %v143
    %v483 = vunpack.c.l.b16 %v144
    %v484 = vunpack.c.h.b16 %v144
    %v485 = vunpack.c.l.b16 %v145
    %v486 = vunpack.c.h.b16 %v145
    %v487 = vpack.c.b16 %v293, %v291
    %v488 = vpack.c.b16 %v294, %v292
    %v489 = vpack.c.b16 %v297, %v295
    %v490 = vpack.c.b16 %v298, %v296
    %v491 = vpack.c.b16 %v301, %v299
    %v492 = vpack.c.b16 %v302, %v300
    %v493 = vpack.c.b16 %v305, %v303
    %v494 = vpack.c.b16 %v306, %v304
    %v495 = vpack.c.b16 %v309, %v307
    %v496 = vpack.c.b16 %v310, %v308
    %v497 = vpack.c.b16 %v313, %v311
    %v498 = vpack.c.b16 %v314, %v312
    %v499 = vpack.c.b16 %v317, %v315
    %v500 = vpack.c.b16 %v318, %v316
    %v501 = vpack.c.b16 %v321, %v319
    %v502 = vpack.c.b16 %v322, %v320
    %v503 = vpack.c.b16 %v325, %v323
    %v504 = vpack.c.b16 %v326, %v324
    %v505 = vpack.c.b16 %v329, %v327
    %v506 = vpack.c.b16 %v330, %v328
    %v507 = vpack.c.b16 %v333, %v331
    %v508 = vpack.c.b16 %v334, %v332
    %v509 = vpack.c.b16 %v337, %v335
    %v510 = vpack.c.b16 %v338, %v336
    %v511 = vpack.c.b16 %v341, %v339
    %v512 = vpack.c.b16 %v342, %v340
    %v513 = vpack.c.b16 %v345, %v343
    %v514 = vpack.c.b16 %v346, %v344
    %v515 = vpack.c.b16 %v349, %v347
    %v516 = vpack.c.b16 %v350, %v348
    %v517 = vpack.c.b16 %v353, %v351
    %v518 = vpack.c.b16 %v354, %v352
    %v519 = vpack.c.b16 %v357, %v355
    %v520 = vpack.c.b16 %v358, %v356
    %v521 = vpack.c.b16 %v361, %v359
    %v522 = vpack.c.b16 %v362, %v360
    %v523 = vpack.c.b16 %v365, %v363
    %v524 = vpack.c.b16 %v366, %v364
    %v525 = vpack.c.b16 %v369, %v367
    %v526 = vpack.c.b16 %v370, %v368
    %v527 = vpack.c.b16 %v373, %v371
    %v528 = vpack.c.b16 %v374, %v372
    %v529 = vpack.c.b16 %v377, %v375
    %v530 = vpack.c.b16 %v378, %v376
    %v531 = vpack.c.b16 %v381, %v379
    %v532 = vpack.c.b16 %v382, %v380
    %v533 = vpack.c.b16 %v385, %v383
    %v534 = vpack.c.b16 %v386, %v384
    %v535 = vpack.c.b16 %v389, %v387
    %v536 = vpack.c.b16 %v390, %v388
    %v537 = vpack.c.b16 %v393, %v391
    %v538 = vpack.c.b16 %v394, %v392
    %v539 = vpack.c.b16 %v397, %v395
    %v540 = vpack.c.b16 %v398, %v396
    %v541 = vpack.c.b16 %v401, %v399
    %v542 = vpack.c.b16 %v402, %v400
    %v543 = vpack.c.b16 %v405, %v403
    %v544 = vpack.c.b16 %v406, %v404
    %v545 = vpack.c.b16 %v409, %v407
    %v546 = vpack.c.b16 %v410, %v408
    %v547 = vpack.c.b16 %v413, %v411
    %v548 = vpack.c.b16 %v414, %v412
    %v549 = vpack.c.b16 %v417, %v415
    %v550 = vpack.c.b16 %v418, %v416
    %v551 = vpack.c.b16 %v421, %v419
    %v552 = vpack.c.b16 %v422, %v420
    %v553 = vpack.c.b16 %v425, %v423
    %v554 = vpack.c.b16 %v426, %v424
    %v555 = vpack.c.b16 %v429, %v427
    %v556 = vpack.c.b16 %v430, %v428
    %v557 = vpack.c.b16 %v433, %v431
    %v558 = vpack.c.b16 %v434, %v432
    %v559 = vpack.c.b16 %v437, %v435
    %v560 = vpack.c.b16 %v438, %v436
    %v561 = vpack.c.b16 %v441, %v439
    %v562 = vpack.c.b16 %v442, %v440
    %v563 = vpack.c.b16 %v445, %v443
    %v564 = vpack.c.b16 %v446, %v444
    %v565 = vpack.c.b16 %v449, %v447
    %v566 = vpack.c.b16 %v450, %v448
    %v567 = vpack.c.b16 %v453, %v451
    %v568 = vpack.c.b16 %v454, %v452
    %v569 = vpack.c.b16 %v457, %v455
    %v570 = vpack.c.b16 %v458, %v456
    %v571 = vpack.c.b16 %v461, %v459
    %v572 = vpack.c.b16 %v462, %v460
    %v573 = vpack.c.b16 %v465, %v463
    %v574 = vpack.c.b16 %v466, %v464
    %v575 = vpack.c.b16 %v469, %v467
    %v576 = vpack.c.b16 %v470, %v468
    %v577 = vpack.c.b16 %v473, %v471
    %v578 = vpack.c.b16 %v474, %v472
    %v579 = vpack.c.b16 %v477, %v475
    %v580 = vpack.c.b16 %v478, %v476
    %v581 = vpack.c.b16 %v481, %v479
    %v582 = vpack.c.b16 %v482, %v480
    %v583 = vpack.c.b16 %v485, %v483
    %v584 = vpack.c.b16 %v486, %v484
    %vm683 = vcmask 130048
    %v685 = vsel %vm683, %v186, 0
    %687 = vmatprep.subr.bf16.mxu0 %v502
    %688 = vmatpush1.bf16.msra.mxu0 %v501
    %689 = vmatprep.subr.bf16.mxu0 %v500
    %690 = vmatpush1.bf16.msra.mxu0 %v499
    %691 = vmatprep.subr.bf16.mxu0 %v498
    %692 = vmatpush1.bf16.msra.mxu0 %v497
    %693 = vmatprep.subr.bf16.mxu0 %v496
    %694 = vmatpush1.bf16.msra.mxu0 %v495
    %695 = vmatprep.subr.bf16.mxu0 %v494
    %696 = vmatpush1.bf16.msra.mxu0 %v493
    %697 = vmatprep.subr.bf16.mxu0 %v492
    %698 = vmatpush1.bf16.msra.mxu0 %v491
    %699 = vmatprep.subr.bf16.mxu0 %v490
    %700 = vmatpush1.bf16.msra.mxu0 %v489
    %701 = vmatprep.subr.bf16.mxu0 %v488
    %702 = vmatpush1.bf16.msra.mxu0 %v487
    %703 = vmatprep.subr.bf16.mxu0 %v518
    %704 = vmatpush2.bf16.msra.mxu0 %v517
    %705 = vmatprep.subr.bf16.mxu0 %v516
    %706 = vmatpush2.bf16.msra.mxu0 %v515
    %707 = vmatprep.subr.bf16.mxu0 %v514
    %708 = vmatpush2.bf16.msra.mxu0 %v513
    %709 = vmatprep.subr.bf16.mxu0 %v512
    %710 = vmatpush2.bf16.msra.mxu0 %v511
    %711 = vmatprep.subr.bf16.mxu0 %v510
    %712 = vmatpush2.bf16.msra.mxu0 %v509
    %713 = vmatprep.subr.bf16.mxu0 %v508
    %714 = vmatpush2.bf16.msra.mxu0 %v507
    %715 = vmatprep.subr.bf16.mxu0 %v506
    %716 = vmatpush2.bf16.msra.mxu0 %v505
    %717 = vmatprep.subr.bf16.mxu0 %v504
    %718 = vmatpush2.bf16.msra.mxu0 %v503
    %719 = vmatprep.mubr.bf16.mxu0 %v181
    %720 = vmatmul.mubr.bf16.gmra.mxu0 %v180
    %v721 = vpop.f32.mrf.mxu0
    %v722 = vadd.f32 %v151, %v721
    %v723 = vpop.f32.mrf.mxu0
    %v724 = vadd.f32 %v155, %v723
    %v725 = vpop.f32.mrf.mxu0
    %v726 = vadd.f32 %v151, %v725
    %v727 = vpop.f32.mrf.mxu0
    %v728 = vadd.f32 %v155, %v727
    %729 = vdwg.mxu0
    %730 = vmatprep.subr.bf16.mxu0 %v534
    %731 = vmatpush1.bf16.msra.mxu0 %v533
    %732 = vmatprep.subr.bf16.mxu0 %v532
    %733 = vmatpush1.bf16.msra.mxu0 %v531
    %734 = vmatprep.subr.bf16.mxu0 %v530
    %735 = vmatpush1.bf16.msra.mxu0 %v529
    %736 = vmatprep.subr.bf16.mxu0 %v528
    %737 = vmatpush1.bf16.msra.mxu0 %v527
    %738 = vmatprep.subr.bf16.mxu0 %v526
    %739 = vmatpush1.bf16.msra.mxu0 %v525
    %740 = vmatprep.subr.bf16.mxu0 %v524
    %741 = vmatpush1.bf16.msra.mxu0 %v523
    %742 = vmatprep.subr.bf16.mxu0 %v522
    %743 = vmatpush1.bf16.msra.mxu0 %v521
    %744 = vmatprep.subr.bf16.mxu0 %v520
    %745 = vmatpush1.bf16.msra.mxu0 %v519
    %746 = vmatprep.subr.bf16.mxu0 %v550
    %747 = vmatpush2.bf16.msra.mxu0 %v549
    %748 = vmatprep.subr.bf16.mxu0 %v548
    %749 = vmatpush2.bf16.msra.mxu0 %v547
    %750 = vmatprep.subr.bf16.mxu0 %v546
    %751 = vmatpush2.bf16.msra.mxu0 %v545
    %752 = vmatprep.subr.bf16.mxu0 %v544
    %753 = vmatpush2.bf16.msra.mxu0 %v543
    %754 = vmatprep.subr.bf16.mxu0 %v542
    %755 = vmatpush2.bf16.msra.mxu0 %v541
    %756 = vmatprep.subr.bf16.mxu0 %v540
    %757 = vmatpush2.bf16.msra.mxu0 %v539
    %758 = vmatprep.subr.bf16.mxu0 %v538
    %759 = vmatpush2.bf16.msra.mxu0 %v537
    %760 = vmatprep.subr.bf16.mxu0 %v536
    %761 = vmatpush2.bf16.msra.mxu0 %v535
    %762 = vmatprep.mubr.bf16.mxu0 %v183
    %763 = vmatmul.mubr.bf16.gmra.mxu0 %v182
    %v764 = vpop.f32.mrf.mxu0
    %v765 = vadd.f32 %v722, %v764
    %v766 = vpop.f32.mrf.mxu0
    %v767 = vadd.f32 %v724, %v766
    %v768 = vpop.f32.mrf.mxu0
    %v769 = vadd.f32 %v726, %v768
    %v770 = vpop.f32.mrf.mxu0
    %v771 = vadd.f32 %v728, %v770
    %772 = vdwg.mxu0
    %773 = vmatprep.subr.bf16.mxu0 %v566
    %774 = vmatpush1.bf16.msra.mxu0 %v565
    %775 = vmatprep.subr.bf16.mxu0 %v564
    %776 = vmatpush1.bf16.msra.mxu0 %v563
    %777 = vmatprep.subr.bf16.mxu0 %v562
    %778 = vmatpush1.bf16.msra.mxu0 %v561
    %779 = vmatprep.subr.bf16.mxu0 %v560
    %780 = vmatpush1.bf16.msra.mxu0 %v559
    %781 = vmatprep.subr.bf16.mxu0 %v558
    %782 = vmatpush1.bf16.msra.mxu0 %v557
    %783 = vmatprep.subr.bf16.mxu0 %v556
    %784 = vmatpush1.bf16.msra.mxu0 %v555
    %785 = vmatprep.subr.bf16.mxu0 %v554
    %786 = vmatpush1.bf16.msra.mxu0 %v553
    %787 = vmatprep.subr.bf16.mxu0 %v552
    %788 = vmatpush1.bf16.msra.mxu0 %v551
    %789 = vmatprep.subr.bf16.mxu0 %v582
    %790 = vmatpush2.bf16.msra.mxu0 %v581
    %791 = vmatprep.subr.bf16.mxu0 %v580
    %792 = vmatpush2.bf16.msra.mxu0 %v579
    %793 = vmatprep.subr.bf16.mxu0 %v578
    %794 = vmatpush2.bf16.msra.mxu0 %v577
    %795 = vmatprep.subr.bf16.mxu0 %v576
    %796 = vmatpush2.bf16.msra.mxu0 %v575
    %797 = vmatprep.subr.bf16.mxu0 %v574
    %798 = vmatpush2.bf16.msra.mxu0 %v573
    %799 = vmatprep.subr.bf16.mxu0 %v572
    %800 = vmatpush2.bf16.msra.mxu0 %v571
    %801 = vmatprep.subr.bf16.mxu0 %v570
    %802 = vmatpush2.bf16.msra.mxu0 %v569
    %803 = vmatprep.subr.bf16.mxu0 %v568
    %804 = vmatpush2.bf16.msra.mxu0 %v567
    %805 = vmatprep.mubr.bf16.mxu0 %v185
    %806 = vmatmul.mubr.bf16.gmra.mxu0 %v184
    %v807 = vpop.f32.mrf.mxu0
    %v808 = vadd.f32 %v765, %v807
    %v809 = vpop.f32.mrf.mxu0
    %v810 = vadd.f32 %v767, %v809
    %v811 = vpop.f32.mrf.mxu0
    %v812 = vadd.f32 %v769, %v811
    %v813 = vpop.f32.mrf.mxu0
    %v814 = vadd.f32 %v771, %v813
    %815 = vdwg.mxu0
    %816 = vmatprep.subr.bf16.mxu0 0
    %817 = vmatpush1.bf16.msra.mxu0 0
    %818 = vmatprep.subr.bf16.mxu0 0
    %819 = vmatpush1.bf16.msra.mxu0 0
    %820 = vmatprep.subr.bf16.mxu0 0
    %821 = vmatpush1.bf16.msra.mxu0 0
    %822 = vmatprep.subr.bf16.mxu0 0
    %823 = vmatpush1.bf16.msra.mxu0 0
    %824 = vmatprep.subr.bf16.mxu0 0
    %825 = vmatpush1.bf16.msra.mxu0 0
    %826 = vmatprep.subr.bf16.mxu0 0
    %827 = vmatpush1.bf16.msra.mxu0 0
    %828 = vmatprep.subr.bf16.mxu0 0
    %829 = vmatpush1.bf16.msra.mxu0 0
    %830 = vmatprep.subr.bf16.mxu0 %v584
    %831 = vmatpush1.bf16.msra.mxu0 %v583
    %832 = vmatprep.subr.bf16.mxu0 0
    %833 = vmatpush2.bf16.msra.mxu0 0
    %834 = vmatprep.subr.bf16.mxu0 0
    %835 = vmatpush2.bf16.msra.mxu0 0
    %836 = vmatprep.subr.bf16.mxu0 0
    %837 = vmatpush2.bf16.msra.mxu0 0
    %838 = vmatprep.subr.bf16.mxu0 0
    %839 = vmatpush2.bf16.msra.mxu0 0
    %840 = vmatprep.subr.bf16.mxu0 0
    %841 = vmatpush2.bf16.msra.mxu0 0
    %842 = vmatprep.subr.bf16.mxu0 0
    %843 = vmatpush2.bf16.msra.mxu0 0
    %844 = vmatprep.subr.bf16.mxu0 0
    %845 = vmatpush2.bf16.msra.mxu0 0
    %846 = vmatprep.subr.bf16.mxu0 0
    %847 = vmatpush2.bf16.msra.mxu0 0
    %848 = vmatprep.mubr.bf16.mxu0 0
    %849 = vmatmul.mubr.bf16.gmra.mxu0 %v685
    %v850 = vpop.f32.mrf.mxu0
    %v851 = vadd.f32 %v808, %v850
    %v852 = vpop.f32.mrf.mxu0
    %v853 = vadd.f32 %v810, %v852
    %v854 = vpop.f32.mrf.mxu0
    %v855 = vadd.f32 %v812, %v854
    %v856 = vpop.f32.mrf.mxu0
    %v857 = vadd.f32 %v814, %v856
    %858 = vdwg.mxu0
    %v859 = vmax.f32 %v851, 0.0
    %v860 = vmax.f32 %v853, 0.0
    %v861 = vmax.f32 %v855, 0.0
    %v862 = vmax.f32 %v857, 0.0
    %v863 = vld [vmem:[%s3] sm:$0xff]
    %v864 = vld [vmem:[%s3 + $0x8] sm:$0xff]
    %v865 = vld [vmem:[%s3 + $0x10] sm:$0xff]
    %v866 = vld [vmem:[%s3 + $0x18] sm:$0xff]
    %v867 = vld [vmem:[%s3 + $0x20] sm:$0xff]
    %v868 = vld [vmem:[%s3 + $0x28] sm:$0xff]
    %v869 = vld [vmem:[%s3 + $0x30] sm:$0xff]
    %v870 = vld [vmem:[%s3 + $0x38] sm:$0xff]
    %v871 = vld [vmem:[%s3 + $0x40] sm:$0xff]
    %v872 = vld [vmem:[%s3 + $0x48] sm:$0xff]
    %v873 = vld [vmem:[%s3 + $0x50] sm:$0xff]
    %v874 = vld [vmem:[%s3 + $0x58] sm:$0xff]
    %v875 = vld [vmem:[%s3 + $0x60] sm:$0xff]
    %v876 = vld [vmem:[%s3 + $0x68] sm:$0xff]
    %v877 = vld [vmem:[%s3 + $0x70] sm:$0xff]
    %v878 = vld [vmem:[%s3 + $0x78] sm:$0xff]
    %v879 = vld [vmem:[%s3 + $0x80] sm:$0xff]
    %v880 = vld [vmem:[%s3 + $0x88] sm:$0xff]
    %v881 = vld [vmem:[%s3 + $0x90] sm:$0xff]
    %v882 = vld [vmem:[%s3 + $0x98] sm:$0xff]
    %v883 = vld [vmem:[%s3 + $0xa0] sm:$0xff]
    %v884 = vld [vmem:[%s3 + $0xa8] sm:$0xff]
    %v885 = vld [vmem:[%s3 + $0xb0] sm:$0xff]
    %v886 = vld [vmem:[%s3 + $0xb8] sm:$0xff]
    %v887 = vld [vmem:[%s3 + $0xc0] sm:$0xff]
    %v888 = vld [vmem:[%s3 + $0xc8] sm:$0xff]
    %v889 = vld [vmem:[%s3 + $0xd0] sm:$0xff]
    %v890 = vld [vmem:[%s3 + $0xd8] sm:$0xff]
    %v891 = vld [vmem:[%s3 + $0xe0] sm:$0xff]
    %v892 = vld [vmem:[%s3 + $0xe8] sm:$0xff]
    %v893 = vld [vmem:[%s3 + $0xf0] sm:$0xff]
    %v894 = vld [vmem:[%s3 + $0xf8] sm:$0xff]
    %v895 = vld [vmem:[%s4] sm:$0x1]
    %v897 = vlaneseq
    %v898 = vshrl.u32 %v897, 7
    %v899 = vsub.s32 0, %v898
    %v900 = vrot.slane %v895, %v899
    %902 = vmatprep.subr.mxu0 0.0
    %903 = vmatpush1.msra.mxu0 %v878
    %904 = vmatprep.subr.mxu0 0.0
    %905 = vmatpush1.msra.mxu0 %v877
    %906 = vmatprep.subr.mxu0 0.0
    %907 = vmatpush1.msra.mxu0 %v876
    %908 = vmatprep.subr.mxu0 0.0
    %909 = vmatpush1.msra.mxu0 %v875
    %910 = vmatprep.subr.mxu0 0.0
    %911 = vmatpush1.msra.mxu0 %v874
    %912 = vmatprep.subr.mxu0 0.0
    %913 = vmatpush1.msra.mxu0 %v873
    %914 = vmatprep.subr.mxu0 0.0
    %915 = vmatpush1.msra.mxu0 %v872
    %916 = vmatprep.subr.mxu0 0.0
    %917 = vmatpush1.msra.mxu0 %v871
    %918 = vmatprep.subr.mxu0 0.0
    %919 = vmatpush1.msra.mxu0 %v870
    %920 = vmatprep.subr.mxu0 0.0
    %921 = vmatpush1.msra.mxu0 %v869
    %922 = vmatprep.subr.mxu0 0.0
    %923 = vmatpush1.msra.mxu0 %v868
    %924 = vmatprep.subr.mxu0 0.0
    %925 = vmatpush1.msra.mxu0 %v867
    %926 = vmatprep.subr.mxu0 0.0
    %927 = vmatpush1.msra.mxu0 %v866
    %928 = vmatprep.subr.mxu0 0.0
    %929 = vmatpush1.msra.mxu0 %v865
    %930 = vmatprep.subr.mxu0 0.0
    %931 = vmatpush1.msra.mxu0 %v864
    %932 = vmatprep.subr.mxu0 0.0
    %933 = vmatpush1.msra.mxu0 %v863
    %934 = vmatprep.subr.mxu0 0.0
    %935 = vmatpush2.msra.mxu0 %v894
    %936 = vmatprep.subr.mxu0 0.0
    %937 = vmatpush2.msra.mxu0 %v893
    %938 = vmatprep.subr.mxu0 0.0
    %939 = vmatpush2.msra.mxu0 %v892
    %940 = vmatprep.subr.mxu0 0.0
    %941 = vmatpush2.msra.mxu0 %v891
    %942 = vmatprep.subr.mxu0 0.0
    %943 = vmatpush2.msra.mxu0 %v890
    %944 = vmatprep.subr.mxu0 0.0
    %945 = vmatpush2.msra.mxu0 %v889
    %946 = vmatprep.subr.mxu0 0.0
    %947 = vmatpush2.msra.mxu0 %v888
    %948 = vmatprep.subr.mxu0 0.0
    %949 = vmatpush2.msra.mxu0 %v887
    %950 = vmatprep.subr.mxu0 0.0
    %951 = vmatpush2.msra.mxu0 %v886
    %952 = vmatprep.subr.mxu0 0.0
    %953 = vmatpush2.msra.mxu0 %v885
    %954 = vmatprep.subr.mxu0 0.0
    %955 = vmatpush2.msra.mxu0 %v884
    %956 = vmatprep.subr.mxu0 0.0
    %957 = vmatpush2.msra.mxu0 %v883
    %958 = vmatprep.subr.mxu0 0.0
    %959 = vmatpush2.msra.mxu0 %v882
    %960 = vmatprep.subr.mxu0 0.0
    %961 = vmatpush2.msra.mxu0 %v881
    %962 = vmatprep.subr.mxu0 0.0
    %963 = vmatpush2.msra.mxu0 %v880
    %964 = vmatprep.subr.mxu0 0.0
    %965 = vmatpush2.msra.mxu0 %v879
    %966 = vmatprep.mubr.f32.mxu0 %v860
    %967 = vmatmul.mubr.f32.gmra.mxu0 %v859
    %v968 = vpop.f32.mrf.mxu0
    %v969 = vadd.f32 %v900, %v968
    %v970 = vpop.f32.mrf.mxu0
    %971 = vmatprep.mubr.f32.mxu0 %v862
    %972 = vmatmul.mubr.f32.gmra.mxu0 %v861
    %v973 = vpop.f32.mrf.mxu0
    %v974 = vadd.f32 %v900, %v973
    %v975 = vpop.f32.mrf.mxu0
    %976 = vdwg.mxu0
    %v977 = vld [vmem:[%s9] sm:$0xff]
    %v978 = vld [vmem:[%s9 + $0x8] sm:$0xff]
    %v979 = vmul.f32 %v969, 0.5
    %v980 = vmul.f32 %v974, 0.5
    %v981 = vmul.f32 %v979, 1.442695
    %v982 = vpow.pop %v981
    %v983 = vmul.f32 %v980, 1.442695
    %v984 = vpow.pop %v983
    %987 = vrot.lane.b32.xlu0 %v982, 126
    %v988 = vpop.permute.xlu0 %987
    %989 = vrot.lane.b32.xlu0 %v984, 126
    %v990 = vpop.permute.xlu0 %989
    %v993 = vmul.f32 %v977, %v988
    %v994 = vmul.f32 %v978, %v990
    %v995 = vadd.f32 %v969, %v993
    %v996 = vadd.f32 %v974, %v994
    %v997 = vld [vmem:[%s5] sm:$0xf]
    %999 = vset.pattern.permute.xlu0 0
    %1000 = vperm.xlu0 %999, %v995
    %v1001 = vpop.permute.xlu0 %1000
    %1004 = vset.pattern.permute.xlu0 0
    %1005 = vperm.xlu0 %1004, %v996
    %v1006 = vpop.permute.xlu0 %1005
    %v1009 = vlaneseq
    %v1010 = vshrl.u32 %v1009, 7
    %v1011 = vsub.s32 0, %v1010
    %v1012 = vrot.slane %v997, %v1011
    %v1013 = vlaneseq
    %v1014 = vshrl.u32 %v1013, 7
    %v1015 = vsub.s32 2, %v1014
    %v1016 = vrot.slane %v997, %v1015
    %v1019 = vlaneseq
    %v1020 = vshrl.u32 %v1019, 7
    %v1021 = vsub.s32 0, %v1020
    %v1022 = vrot.slane %v1012, %v1021
    %v1023 = vlaneseq
    %v1024 = vshrl.u32 %v1023, 7
    %v1025 = vsub.s32 0, %v1024
    %v1026 = vrot.slane %v1016, %v1025
    %v1027 = vmul.f32 %v1001, %v1022
    %v1028 = vmul.f32 %v1001, %v1026
    %v1029 = vmul.f32 %v1006, %v1022
    %v1030 = vmul.f32 %v1006, %v1026
    %1031 = vset.pattern.permute.xlu0 1
    %1032 = vperm.xlu0 %1031, %v995
    %v1033 = vpop.permute.xlu0 %1032
    %1035 = vset.pattern.permute.xlu0 1
    %1036 = vperm.xlu0 %1035, %v996
    %v1037 = vpop.permute.xlu0 %1036
    %v1039 = vlaneseq
    %v1040 = vshrl.u32 %v1039, 7
    %v1041 = vsub.s32 1, %v1040
    %v1042 = vrot.slane %v997, %v1041
    %v1043 = vlaneseq
    %v1044 = vshrl.u32 %v1043, 7
    %v1045 = vsub.s32 3, %v1044
    %v1046 = vrot.slane %v997, %v1045
    %v1049 = vlaneseq
    %v1050 = vshrl.u32 %v1049, 7
    %v1051 = vsub.s32 1, %v1050
    %v1052 = vrot.slane %v1042, %v1051
    %v1053 = vlaneseq
    %v1054 = vshrl.u32 %v1053, 7
    %v1055 = vsub.s32 1, %v1054
    %v1056 = vrot.slane %v1046, %v1055
    %v1057 = vmul.f32 %v1033, %v1052
    %v1058 = vmul.f32 %v1033, %v1056
    %v1059 = vmul.f32 %v1037, %v1052
    %v1060 = vmul.f32 %v1037, %v1056
    %v1061 = vadd.f32 %v1027, %v1057
    %v1062 = vadd.f32 %v1028, %v1058
    %v1063 = vadd.f32 %v1029, %v1059
    %v1064 = vadd.f32 %v1030, %v1060
    %v1065 = vld [vmem:[%s6] sm:$0x3]
    %v1067 = vlaneseq
    %v1068 = vshrl.u32 %v1067, 7
    %v1069 = vsub.s32 0, %v1068
    %v1070 = vrot.slane %v1065, %v1069
    %v1071 = vlaneseq
    %v1072 = vshrl.u32 %v1071, 7
    %v1073 = vsub.s32 1, %v1072
    %v1074 = vrot.slane %v1065, %v1073
    %v1077 = vadd.f32 %v1061, %v1070
    %v1078 = vadd.f32 %v1062, %v1074
    %v1079 = vadd.f32 %v1063, %v1070
    %v1080 = vadd.f32 %v1064, %v1074
    %v1081 = vmax.f32 %v1077, 0.0
    %v1082 = vmax.f32 %v1078, 0.0
    %v1083 = vmax.f32 %v1079, 0.0
    %v1084 = vmax.f32 %v1080, 0.0
    %v1085 = vpack.c.bf16 %v1083, %v1081
    %v1086 = vpack.c.bf16 %v1084, %v1082
    %v1087 = vld [vmem:[%s7] sm:$0xff]
    %v1088 = vld [vmem:[%s7 + $0x8] sm:$0xff]
    %v1089 = vld [vmem:[%s7 + $0x10] sm:$0xff]
    %v1090 = vld [vmem:[%s7 + $0x18] sm:$0xf]
    %v1091 = vld [vmem:[%s7 + $0x1c] sm:$0xff]
    %v1092 = vld [vmem:[%s7 + $0x24] sm:$0xff]
    %v1093 = vld [vmem:[%s7 + $0x2c] sm:$0xff]
    %v1094 = vld [vmem:[%s7 + $0x34] sm:$0xf]
    %v1095 = vld [vmem:[%s7 + $0x38] sm:$0xff]
    %v1096 = vld [vmem:[%s7 + $0x40] sm:$0xff]
    %v1097 = vld [vmem:[%s7 + $0x48] sm:$0xff]
    %v1098 = vld [vmem:[%s7 + $0x50] sm:$0xf]
    %v1099 = vld [vmem:[%s7 + $0x54] sm:$0xff]
    %v1100 = vld [vmem:[%s7 + $0x5c] sm:$0xff]
    %v1101 = vld [vmem:[%s7 + $0x64] sm:$0xff]
    %v1102 = vld [vmem:[%s7 + $0x6c] sm:$0xf]
    %v1103 = vld [vmem:[%s7 + $0x70] sm:$0xff]
    %v1104 = vld [vmem:[%s7 + $0x78] sm:$0xff]
    %v1105 = vld [vmem:[%s7 + $0x80] sm:$0xff]
    %v1106 = vld [vmem:[%s7 + $0x88] sm:$0xf]
    %v1107 = vld [vmem:[%s7 + $0x8c] sm:$0xff]
    %v1108 = vld [vmem:[%s7 + $0x94] sm:$0xff]
    %v1109 = vld [vmem:[%s7 + $0x9c] sm:$0xff]
    %v1110 = vld [vmem:[%s7 + $0xa4] sm:$0xf]
    %v1111 = vld [vmem:[%s7 + $0xa8] sm:$0xff]
    %v1112 = vld [vmem:[%s7 + $0xb0] sm:$0xff]
    %v1113 = vld [vmem:[%s7 + $0xb8] sm:$0xff]
    %v1114 = vld [vmem:[%s7 + $0xc0] sm:$0xf]
    %v1115 = vld [vmem:[%s7 + $0xc4] sm:$0xff]
    %v1116 = vld [vmem:[%s7 + $0xcc] sm:$0xff]
    %v1117 = vld [vmem:[%s7 + $0xd4] sm:$0xff]
    %v1118 = vld [vmem:[%s7 + $0xdc] sm:$0xf]
    %v1119 = vld [vmem:[%s7 + $0xe0] sm:$0xff]
    %v1120 = vld [vmem:[%s7 + $0xe8] sm:$0xff]
    %v1121 = vld [vmem:[%s7 + $0xf0] sm:$0xff]
    %v1122 = vld [vmem:[%s7 + $0xf8] sm:$0xf]
    %v1123 = vld [vmem:[%s7 + $0xfc] sm:$0xff]
    %v1124 = vld [vmem:[%s7 + $0x104] sm:$0xff]
    %v1125 = vld [vmem:[%s7 + $0x10c] sm:$0xff]
    %v1126 = vld [vmem:[%s7 + $0x114] sm:$0xf]
    %v1127 = vld [vmem:[%s7 + $0x118] sm:$0xff]
    %v1128 = vld [vmem:[%s7 + $0x120] sm:$0xff]
    %v1129 = vld [vmem:[%s7 + $0x128] sm:$0xff]
    %v1130 = vld [vmem:[%s7 + $0x130] sm:$0xf]
    %v1131 = vld [vmem:[%s7 + $0x134] sm:$0xff]
    %v1132 = vld [vmem:[%s7 + $0x13c] sm:$0xff]
    %v1133 = vld [vmem:[%s7 + $0x144] sm:$0xff]
    %v1134 = vld [vmem:[%s7 + $0x14c] sm:$0xf]
    %v1135 = vld [vmem:[%s7 + $0x150] sm:$0xff]
    %v1136 = vld [vmem:[%s7 + $0x158] sm:$0xff]
    %v1137 = vld [vmem:[%s7 + $0x160] sm:$0xff]
    %v1138 = vld [vmem:[%s7 + $0x168] sm:$0xf]
    %v1139 = vld [vmem:[%s7 + $0x16c] sm:$0xff]
    %v1140 = vld [vmem:[%s7 + $0x174] sm:$0xff]
    %v1141 = vld [vmem:[%s7 + $0x17c] sm:$0xff]
    %v1142 = vld [vmem:[%s7 + $0x184] sm:$0xf]
    %v1143 = vld [vmem:[%s7 + $0x188] sm:$0xff]
    %v1144 = vld [vmem:[%s7 + $0x190] sm:$0xff]
    %v1145 = vld [vmem:[%s7 + $0x198] sm:$0xff]
    %v1146 = vld [vmem:[%s7 + $0x1a0] sm:$0xf]
    %v1147 = vld [vmem:[%s7 + $0x1a4] sm:$0xff]
    %v1148 = vld [vmem:[%s7 + $0x1ac] sm:$0xff]
    %v1149 = vld [vmem:[%s7 + $0x1b4] sm:$0xff]
    %v1150 = vld [vmem:[%s7 + $0x1bc] sm:$0xf]
    %v1151 = vld [vmem:[%s7 + $0x1c0] sm:$0xff]
    %v1152 = vld [vmem:[%s7 + $0x1c8] sm:$0xff]
    %v1153 = vld [vmem:[%s7 + $0x1d0] sm:$0xff]
    %v1154 = vld [vmem:[%s7 + $0x1d8] sm:$0xf]
    %v1155 = vld [vmem:[%s7 + $0x1dc] sm:$0xff]
    %v1156 = vld [vmem:[%s7 + $0x1e4] sm:$0xff]
    %v1157 = vld [vmem:[%s7 + $0x1ec] sm:$0xff]
    %v1158 = vld [vmem:[%s7 + $0x1f4] sm:$0xf]
    %v1159 = vld [vmem:[%s7 + $0x1f8] sm:$0xff]
    %v1160 = vld [vmem:[%s7 + $0x200] sm:$0xff]
    %v1161 = vld [vmem:[%s7 + $0x208] sm:$0xff]
    %v1162 = vld [vmem:[%s7 + $0x210] sm:$0xf]
    %v1163 = vld [vmem:[%s7 + $0x214] sm:$0xff]
    %v1164 = vld [vmem:[%s7 + $0x21c] sm:$0xff]
    %v1165 = vld [vmem:[%s7 + $0x224] sm:$0xff]
    %v1166 = vld [vmem:[%s7 + $0x22c] sm:$0xf]
    %v1167 = vld [vmem:[%s7 + $0x230] sm:$0xff]
    %v1168 = vld [vmem:[%s7 + $0x238] sm:$0xff]
    %v1169 = vld [vmem:[%s7 + $0x240] sm:$0xff]
    %v1170 = vld [vmem:[%s7 + $0x248] sm:$0xf]
    %v1171 = vld [vmem:[%s7 + $0x24c] sm:$0xff]
    %v1172 = vld [vmem:[%s7 + $0x254] sm:$0xff]
    %v1173 = vld [vmem:[%s7 + $0x25c] sm:$0xff]
    %v1174 = vld [vmem:[%s7 + $0x264] sm:$0xf]
    %v1175 = vld [vmem:[%s7 + $0x268] sm:$0xff]
    %v1176 = vld [vmem:[%s7 + $0x270] sm:$0xff]
    %v1177 = vld [vmem:[%s7 + $0x278] sm:$0xff]
    %v1178 = vld [vmem:[%s7 + $0x280] sm:$0xf]
    %v1179 = vld [vmem:[%s7 + $0x284] sm:$0xff]
    %v1180 = vld [vmem:[%s7 + $0x28c] sm:$0xff]
    %v1181 = vld [vmem:[%s7 + $0x294] sm:$0xff]
    %v1182 = vld [vmem:[%s7 + $0x29c] sm:$0xf]
    %v1183 = vld [vmem:[%s7 + $0x2a0] sm:$0xff]
    %v1184 = vld [vmem:[%s7 + $0x2a8] sm:$0xff]
    %v1185 = vld [vmem:[%s7 + $0x2b0] sm:$0xff]
    %v1186 = vld [vmem:[%s7 + $0x2b8] sm:$0xf]
    %v1187 = vld [vmem:[%s7 + $0x2bc] sm:$0xff]
    %v1188 = vld [vmem:[%s7 + $0x2c4] sm:$0xff]
    %v1189 = vld [vmem:[%s7 + $0x2cc] sm:$0xff]
    %v1190 = vld [vmem:[%s7 + $0x2d4] sm:$0xf]
    %v1191 = vld [vmem:[%s7 + $0x2d8] sm:$0xff]
    %v1192 = vld [vmem:[%s7 + $0x2e0] sm:$0xff]
    %v1193 = vld [vmem:[%s7 + $0x2e8] sm:$0xff]
    %v1194 = vld [vmem:[%s7 + $0x2f0] sm:$0xf]
    %v1195 = vld [vmem:[%s7 + $0x2f4] sm:$0xff]
    %v1196 = vld [vmem:[%s7 + $0x2fc] sm:$0xff]
    %v1197 = vld [vmem:[%s7 + $0x304] sm:$0xff]
    %v1198 = vld [vmem:[%s7 + $0x30c] sm:$0xf]
    %v1199 = vld [vmem:[%s7 + $0x310] sm:$0xff]
    %v1200 = vld [vmem:[%s7 + $0x318] sm:$0xff]
    %v1201 = vld [vmem:[%s7 + $0x320] sm:$0xff]
    %v1202 = vld [vmem:[%s7 + $0x328] sm:$0xf]
    %v1203 = vld [vmem:[%s7 + $0x32c] sm:$0xff]
    %v1204 = vld [vmem:[%s7 + $0x334] sm:$0xff]
    %v1205 = vld [vmem:[%s7 + $0x33c] sm:$0xff]
    %v1206 = vld [vmem:[%s7 + $0x344] sm:$0xf]
    %v1207 = vld [vmem:[%s7 + $0x348] sm:$0xff]
    %v1208 = vld [vmem:[%s7 + $0x350] sm:$0xff]
    %v1209 = vld [vmem:[%s7 + $0x358] sm:$0xff]
    %v1210 = vld [vmem:[%s7 + $0x360] sm:$0xf]
    %v1211 = vld [vmem:[%s7 + $0x364] sm:$0xff]
    %v1212 = vld [vmem:[%s7 + $0x36c] sm:$0xff]
    %v1213 = vld [vmem:[%s7 + $0x374] sm:$0xff]
    %v1214 = vld [vmem:[%s7 + $0x37c] sm:$0xf]
    %v1215 = vld [vmem:[%s8] sm:$0x7f]
    %v1217 = vlaneseq
    %v1218 = vshrl.u32 %v1217, 7
    %v1219 = vsub.s32 0, %v1218
    %v1220 = vrot.slane %v1215, %v1219
    %v1221 = vlaneseq
    %v1222 = vshrl.u32 %v1221, 7
    %v1223 = vsub.s32 1, %v1222
    %v1224 = vrot.slane %v1215, %v1223
    %v1225 = vlaneseq
    %v1226 = vshrl.u32 %v1225, 7
    %v1227 = vsub.s32 2, %v1226
    %v1228 = vrot.slane %v1215, %v1227
    %v1229 = vlaneseq
    %v1230 = vshrl.u32 %v1229, 7
    %v1231 = vsub.s32 3, %v1230
    %v1232 = vrot.slane %v1215, %v1231
    %v1233 = vlaneseq
    %v1234 = vshrl.u32 %v1233, 7
    %v1235 = vsub.s32 4, %v1234
    %v1236 = vrot.slane %v1215, %v1235
    %v1237 = vlaneseq
    %v1238 = vshrl.u32 %v1237, 7
    %v1239 = vsub.s32 5, %v1238
    %v1240 = vrot.slane %v1215, %v1239
    %v1241 = vlaneseq
    %v1242 = vshrl.u32 %v1241, 7
    %v1243 = vsub.s32 6, %v1242
    %v1244 = vrot.slane %v1215, %v1243
    %v1380 = vunpack.c.l.b16 %v1087
    %v1381 = vunpack.c.h.b16 %v1087
    %v1382 = vunpack.c.l.b16 %v1088
    %v1383 = vunpack.c.h.b16 %v1088
    %v1384 = vunpack.c.l.b16 %v1089
    %v1385 = vunpack.c.h.b16 %v1089
    %v1386 = vunpack.c.l.b16 %v1090
    %v1387 = vunpack.c.l.b16 %v1091
    %v1388 = vunpack.c.h.b16 %v1091
    %v1389 = vunpack.c.l.b16 %v1092
    %v1390 = vunpack.c.h.b16 %v1092
    %v1391 = vunpack.c.l.b16 %v1093
    %v1392 = vunpack.c.h.b16 %v1093
    %v1393 = vunpack.c.l.b16 %v1094
    %v1394 = vunpack.c.l.b16 %v1095
    %v1395 = vunpack.c.h.b16 %v1095
    %v1396 = vunpack.c.l.b16 %v1096
    %v1397 = vunpack.c.h.b16 %v1096
    %v1398 = vunpack.c.l.b16 %v1097
    %v1399 = vunpack.c.h.b16 %v1097
    %v1400 = vunpack.c.l.b16 %v1098
    %v1401 = vunpack.c.l.b16 %v1099
    %v1402 = vunpack.c.h.b16 %v1099
    %v1403 = vunpack.c.l.b16 %v1100
    %v1404 = vunpack.c.h.b16 %v1100
    %v1405 = vunpack.c.l.b16 %v1101
    %v1406 = vunpack.c.h.b16 %v1101
    %v1407 = vunpack.c.l.b16 %v1102
    %v1408 = vunpack.c.l.b16 %v1103
    %v1409 = vunpack.c.h.b16 %v1103
    %v1410 = vunpack.c.l.b16 %v1104
    %v1411 = vunpack.c.h.b16 %v1104
    %v1412 = vunpack.c.l.b16 %v1105
    %v1413 = vunpack.c.h.b16 %v1105
    %v1414 = vunpack.c.l.b16 %v1106
    %v1415 = vunpack.c.l.b16 %v1107
    %v1416 = vunpack.c.h.b16 %v1107
    %v1417 = vunpack.c.l.b16 %v1108
    %v1418 = vunpack.c.h.b16 %v1108
    %v1419 = vunpack.c.l.b16 %v1109
    %v1420 = vunpack.c.h.b16 %v1109
    %v1421 = vunpack.c.l.b16 %v1110
    %v1422 = vunpack.c.l.b16 %v1111
    %v1423 = vunpack.c.h.b16 %v1111
    %v1424 = vunpack.c.l.b16 %v1112
    %v1425 = vunpack.c.h.b16 %v1112
    %v1426 = vunpack.c.l.b16 %v1113
    %v1427 = vunpack.c.h.b16 %v1113
    %v1428 = vunpack.c.l.b16 %v1114
    %v1429 = vunpack.c.l.b16 %v1115
    %v1430 = vunpack.c.h.b16 %v1115
    %v1431 = vunpack.c.l.b16 %v1116
    %v1432 = vunpack.c.h.b16 %v1116
    %v1433 = vunpack.c.l.b16 %v1117
    %v1434 = vunpack.c.h.b16 %v1117
    %v1435 = vunpack.c.l.b16 %v1118
    %v1436 = vunpack.c.l.b16 %v1119
    %v1437 = vunpack.c.h.b16 %v1119
    %v1438 = vunpack.c.l.b16 %v1120
    %v1439 = vunpack.c.h.b16 %v1120
    %v1440 = vunpack.c.l.b16 %v1121
    %v1441 = vunpack.c.h.b16 %v1121
    %v1442 = vunpack.c.l.b16 %v1122
    %v1443 = vunpack.c.l.b16 %v1123
    %v1444 = vunpack.c.h.b16 %v1123
    %v1445 = vunpack.c.l.b16 %v1124
    %v1446 = vunpack.c.h.b16 %v1124
    %v1447 = vunpack.c.l.b16 %v1125
    %v1448 = vunpack.c.h.b16 %v1125
    %v1449 = vunpack.c.l.b16 %v1126
    %v1450 = vunpack.c.l.b16 %v1127
    %v1451 = vunpack.c.h.b16 %v1127
    %v1452 = vunpack.c.l.b16 %v1128
    %v1453 = vunpack.c.h.b16 %v1128
    %v1454 = vunpack.c.l.b16 %v1129
    %v1455 = vunpack.c.h.b16 %v1129
    %v1456 = vunpack.c.l.b16 %v1130
    %v1457 = vunpack.c.l.b16 %v1131
    %v1458 = vunpack.c.h.b16 %v1131
    %v1459 = vunpack.c.l.b16 %v1132
    %v1460 = vunpack.c.h.b16 %v1132
    %v1461 = vunpack.c.l.b16 %v1133
    %v1462 = vunpack.c.h.b16 %v1133
    %v1463 = vunpack.c.l.b16 %v1134
    %v1464 = vunpack.c.l.b16 %v1135
    %v1465 = vunpack.c.h.b16 %v1135
    %v1466 = vunpack.c.l.b16 %v1136
    %v1467 = vunpack.c.h.b16 %v1136
    %v1468 = vunpack.c.l.b16 %v1137
    %v1469 = vunpack.c.h.b16 %v1137
    %v1470 = vunpack.c.l.b16 %v1138
    %v1471 = vunpack.c.l.b16 %v1139
    %v1472 = vunpack.c.h.b16 %v1139
    %v1473 = vunpack.c.l.b16 %v1140
    %v1474 = vunpack.c.h.b16 %v1140
    %v1475 = vunpack.c.l.b16 %v1141
    %v1476 = vunpack.c.h.b16 %v1141
    %v1477 = vunpack.c.l.b16 %v1142
    %v1478 = vunpack.c.l.b16 %v1143
    %v1479 = vunpack.c.h.b16 %v1143
    %v1480 = vunpack.c.l.b16 %v1144
    %v1481 = vunpack.c.h.b16 %v1144
    %v1482 = vunpack.c.l.b16 %v1145
    %v1483 = vunpack.c.h.b16 %v1145
    %v1484 = vunpack.c.l.b16 %v1146
    %v1485 = vunpack.c.l.b16 %v1147
    %v1486 = vunpack.c.h.b16 %v1147
    %v1487 = vunpack.c.l.b16 %v1148
    %v1488 = vunpack.c.h.b16 %v1148
    %v1489 = vunpack.c.l.b16 %v1149
    %v1490 = vunpack.c.h.b16 %v1149
    %v1491 = vunpack.c.l.b16 %v1150
    %v1492 = vunpack.c.l.b16 %v1151
    %v1493 = vunpack.c.h.b16 %v1151
    %v1494 = vunpack.c.l.b16 %v1152
    %v1495 = vunpack.c.h.b16 %v1152
    %v1496 = vunpack.c.l.b16 %v1153
    %v1497 = vunpack.c.h.b16 %v1153
    %v1498 = vunpack.c.l.b16 %v1154
    %v1499 = vunpack.c.l.b16 %v1155
    %v1500 = vunpack.c.h.b16 %v1155
    %v1501 = vunpack.c.l.b16 %v1156
    %v1502 = vunpack.c.h.b16 %v1156
    %v1503 = vunpack.c.l.b16 %v1157
    %v1504 = vunpack.c.h.b16 %v1157
    %v1505 = vunpack.c.l.b16 %v1158
    %v1506 = vunpack.c.l.b16 %v1159
    %v1507 = vunpack.c.h.b16 %v1159
    %v1508 = vunpack.c.l.b16 %v1160
    %v1509 = vunpack.c.h.b16 %v1160
    %v1510 = vunpack.c.l.b16 %v1161
    %v1511 = vunpack.c.h.b16 %v1161
    %v1512 = vunpack.c.l.b16 %v1162
    %v1513 = vunpack.c.l.b16 %v1163
    %v1514 = vunpack.c.h.b16 %v1163
    %v1515 = vunpack.c.l.b16 %v1164
    %v1516 = vunpack.c.h.b16 %v1164
    %v1517 = vunpack.c.l.b16 %v1165
    %v1518 = vunpack.c.h.b16 %v1165
    %v1519 = vunpack.c.l.b16 %v1166
    %v1520 = vunpack.c.l.b16 %v1167
    %v1521 = vunpack.c.h.b16 %v1167
    %v1522 = vunpack.c.l.b16 %v1168
    %v1523 = vunpack.c.h.b16 %v1168
    %v1524 = vunpack.c.l.b16 %v1169
    %v1525 = vunpack.c.h.b16 %v1169
    %v1526 = vunpack.c.l.b16 %v1170
    %v1527 = vunpack.c.l.b16 %v1171
    %v1528 = vunpack.c.h.b16 %v1171
    %v1529 = vunpack.c.l.b16 %v1172
    %v1530 = vunpack.c.h.b16 %v1172
    %v1531 = vunpack.c.l.b16 %v1173
    %v1532 = vunpack.c.h.b16 %v1173
    %v1533 = vunpack.c.l.b16 %v1174
    %v1534 = vunpack.c.l.b16 %v1175
    %v1535 = vunpack.c.h.b16 %v1175
    %v1536 = vunpack.c.l.b16 %v1176
    %v1537 = vunpack.c.h.b16 %v1176
    %v1538 = vunpack.c.l.b16 %v1177
    %v1539 = vunpack.c.h.b16 %v1177
    %v1540 = vunpack.c.l.b16 %v1178
    %v1541 = vunpack.c.l.b16 %v1179
    %v1542 = vunpack.c.h.b16 %v1179
    %v1543 = vunpack.c.l.b16 %v1180
    %v1544 = vunpack.c.h.b16 %v1180
    %v1545 = vunpack.c.l.b16 %v1181
    %v1546 = vunpack.c.h.b16 %v1181
    %v1547 = vunpack.c.l.b16 %v1182
    %v1548 = vunpack.c.l.b16 %v1183
    %v1549 = vunpack.c.h.b16 %v1183
    %v1550 = vunpack.c.l.b16 %v1184
    %v1551 = vunpack.c.h.b16 %v1184
    %v1552 = vunpack.c.l.b16 %v1185
    %v1553 = vunpack.c.h.b16 %v1185
    %v1554 = vunpack.c.l.b16 %v1186
    %v1555 = vunpack.c.l.b16 %v1187
    %v1556 = vunpack.c.h.b16 %v1187
    %v1557 = vunpack.c.l.b16 %v1188
    %v1558 = vunpack.c.h.b16 %v1188
    %v1559 = vunpack.c.l.b16 %v1189
    %v1560 = vunpack.c.h.b16 %v1189
    %v1561 = vunpack.c.l.b16 %v1190
    %v1562 = vunpack.c.l.b16 %v1191
    %v1563 = vunpack.c.h.b16 %v1191
    %v1564 = vunpack.c.l.b16 %v1192
    %v1565 = vunpack.c.h.b16 %v1192
    %v1566 = vunpack.c.l.b16 %v1193
    %v1567 = vunpack.c.h.b16 %v1193
    %v1568 = vunpack.c.l.b16 %v1194
    %v1569 = vunpack.c.l.b16 %v1195
    %v1570 = vunpack.c.h.b16 %v1195
    %v1571 = vunpack.c.l.b16 %v1196
    %v1572 = vunpack.c.h.b16 %v1196
    %v1573 = vunpack.c.l.b16 %v1197
    %v1574 = vunpack.c.h.b16 %v1197
    %v1575 = vunpack.c.l.b16 %v1198
    %v1576 = vunpack.c.l.b16 %v1199
    %v1577 = vunpack.c.h.b16 %v1199
    %v1578 = vunpack.c.l.b16 %v1200
    %v1579 = vunpack.c.h.b16 %v1200
    %v1580 = vunpack.c.l.b16 %v1201
    %v1581 = vunpack.c.h.b16 %v1201
    %v1582 = vunpack.c.l.b16 %v1202
    %v1583 = vunpack.c.l.b16 %v1203
    %v1584 = vunpack.c.h.b16 %v1203
    %v1585 = vunpack.c.l.b16 %v1204
    %v1586 = vunpack.c.h.b16 %v1204
    %v1587 = vunpack.c.l.b16 %v1205
    %v1588 = vunpack.c.h.b16 %v1205
    %v1589 = vunpack.c.l.b16 %v1206
    %v1590 = vunpack.c.l.b16 %v1207
    %v1591 = vunpack.c.h.b16 %v1207
    %v1592 = vunpack.c.l.b16 %v1208
    %v1593 = vunpack.c.h.b16 %v1208
    %v1594 = vunpack.c.l.b16 %v1209
    %v1595 = vunpack.c.h.b16 %v1209
    %v1596 = vunpack.c.l.b16 %v1210
    %v1597 = vunpack.c.l.b16 %v1211
    %v1598 = vunpack.c.h.b16 %v1211
    %v1599 = vunpack.c.l.b16 %v1212
    %v1600 = vunpack.c.h.b16 %v1212
    %v1601 = vunpack.c.l.b16 %v1213
    %v1602 = vunpack.c.h.b16 %v1213
    %v1603 = vunpack.c.l.b16 %v1214
    %v1604 = vpack.c.b16 %v1387, %v1380
    %v1605 = vpack.c.b16 %v1388, %v1381
    %v1606 = vpack.c.b16 %v1389, %v1382
    %v1607 = vpack.c.b16 %v1390, %v1383
    %v1608 = vpack.c.b16 %v1391, %v1384
    %v1609 = vpack.c.b16 %v1392, %v1385
    %v1610 = vpack.c.b16 %v1393, %v1386
    %v1611 = vpack.c.b16 %v1401, %v1394
    %v1612 = vpack.c.b16 %v1402, %v1395
    %v1613 = vpack.c.b16 %v1403, %v1396
    %v1614 = vpack.c.b16 %v1404, %v1397
    %v1615 = vpack.c.b16 %v1405, %v1398
    %v1616 = vpack.c.b16 %v1406, %v1399
    %v1617 = vpack.c.b16 %v1407, %v1400
    %v1618 = vpack.c.b16 %v1415, %v1408
    %v1619 = vpack.c.b16 %v1416, %v1409
    %v1620 = vpack.c.b16 %v1417, %v1410
    %v1621 = vpack.c.b16 %v1418, %v1411
    %v1622 = vpack.c.b16 %v1419, %v1412
    %v1623 = vpack.c.b16 %v1420, %v1413
    %v1624 = vpack.c.b16 %v1421, %v1414
    %v1625 = vpack.c.b16 %v1429, %v1422
    %v1626 = vpack.c.b16 %v1430, %v1423
    %v1627 = vpack.c.b16 %v1431, %v1424
    %v1628 = vpack.c.b16 %v1432, %v1425
    %v1629 = vpack.c.b16 %v1433, %v1426
    %v1630 = vpack.c.b16 %v1434, %v1427
    %v1631 = vpack.c.b16 %v1435, %v1428
    %v1632 = vpack.c.b16 %v1443, %v1436
    %v1633 = vpack.c.b16 %v1444, %v1437
    %v1634 = vpack.c.b16 %v1445, %v1438
    %v1635 = vpack.c.b16 %v1446, %v1439
    %v1636 = vpack.c.b16 %v1447, %v1440
    %v1637 = vpack.c.b16 %v1448, %v1441
    %v1638 = vpack.c.b16 %v1449, %v1442
    %v1639 = vpack.c.b16 %v1457, %v1450
    %v1640 = vpack.c.b16 %v1458, %v1451
    %v1641 = vpack.c.b16 %v1459, %v1452
    %v1642 = vpack.c.b16 %v1460, %v1453
    %v1643 = vpack.c.b16 %v1461, %v1454
    %v1644 = vpack.c.b16 %v1462, %v1455
    %v1645 = vpack.c.b16 %v1463, %v1456
    %v1646 = vpack.c.b16 %v1471, %v1464
    %v1647 = vpack.c.b16 %v1472, %v1465
    %v1648 = vpack.c.b16 %v1473, %v1466
    %v1649 = vpack.c.b16 %v1474, %v1467
    %v1650 = vpack.c.b16 %v1475, %v1468
    %v1651 = vpack.c.b16 %v1476, %v1469
    %v1652 = vpack.c.b16 %v1477, %v1470
    %v1653 = vpack.c.b16 %v1485, %v1478
    %v1654 = vpack.c.b16 %v1486, %v1479
    %v1655 = vpack.c.b16 %v1487, %v1480
    %v1656 = vpack.c.b16 %v1488, %v1481
    %v1657 = vpack.c.b16 %v1489, %v1482
    %v1658 = vpack.c.b16 %v1490, %v1483
    %v1659 = vpack.c.b16 %v1491, %v1484
    %v1660 = vpack.c.b16 %v1499, %v1492
    %v1661 = vpack.c.b16 %v1500, %v1493
    %v1662 = vpack.c.b16 %v1501, %v1494
    %v1663 = vpack.c.b16 %v1502, %v1495
    %v1664 = vpack.c.b16 %v1503, %v1496
    %v1665 = vpack.c.b16 %v1504, %v1497
    %v1666 = vpack.c.b16 %v1505, %v1498
    %v1667 = vpack.c.b16 %v1513, %v1506
    %v1668 = vpack.c.b16 %v1514, %v1507
    %v1669 = vpack.c.b16 %v1515, %v1508
    %v1670 = vpack.c.b16 %v1516, %v1509
    %v1671 = vpack.c.b16 %v1517, %v1510
    %v1672 = vpack.c.b16 %v1518, %v1511
    %v1673 = vpack.c.b16 %v1519, %v1512
    %v1674 = vpack.c.b16 %v1527, %v1520
    %v1675 = vpack.c.b16 %v1528, %v1521
    %v1676 = vpack.c.b16 %v1529, %v1522
    %v1677 = vpack.c.b16 %v1530, %v1523
    %v1678 = vpack.c.b16 %v1531, %v1524
    %v1679 = vpack.c.b16 %v1532, %v1525
    %v1680 = vpack.c.b16 %v1533, %v1526
    %v1681 = vpack.c.b16 %v1541, %v1534
    %v1682 = vpack.c.b16 %v1542, %v1535
    %v1683 = vpack.c.b16 %v1543, %v1536
    %v1684 = vpack.c.b16 %v1544, %v1537
    %v1685 = vpack.c.b16 %v1545, %v1538
    %v1686 = vpack.c.b16 %v1546, %v1539
    %v1687 = vpack.c.b16 %v1547, %v1540
    %v1688 = vpack.c.b16 %v1555, %v1548
    %v1689 = vpack.c.b16 %v1556, %v1549
    %v1690 = vpack.c.b16 %v1557, %v1550
    %v1691 = vpack.c.b16 %v1558, %v1551
    %v1692 = vpack.c.b16 %v1559, %v1552
    %v1693 = vpack.c.b16 %v1560, %v1553
    %v1694 = vpack.c.b16 %v1561, %v1554
    %v1695 = vpack.c.b16 %v1569, %v1562
    %v1696 = vpack.c.b16 %v1570, %v1563
    %v1697 = vpack.c.b16 %v1571, %v1564
    %v1698 = vpack.c.b16 %v1572, %v1565
    %v1699 = vpack.c.b16 %v1573, %v1566
    %v1700 = vpack.c.b16 %v1574, %v1567
    %v1701 = vpack.c.b16 %v1575, %v1568
    %v1702 = vpack.c.b16 %v1583, %v1576
    %v1703 = vpack.c.b16 %v1584, %v1577
    %v1704 = vpack.c.b16 %v1585, %v1578
    %v1705 = vpack.c.b16 %v1586, %v1579
    %v1706 = vpack.c.b16 %v1587, %v1580
    %v1707 = vpack.c.b16 %v1588, %v1581
    %v1708 = vpack.c.b16 %v1589, %v1582
    %v1709 = vpack.c.b16 %v1597, %v1590
    %v1710 = vpack.c.b16 %v1598, %v1591
    %v1711 = vpack.c.b16 %v1599, %v1592
    %v1712 = vpack.c.b16 %v1600, %v1593
    %v1713 = vpack.c.b16 %v1601, %v1594
    %v1714 = vpack.c.b16 %v1602, %v1595
    %v1715 = vpack.c.b16 %v1603, %v1596
    %1828 = vmatprep.subr.bf16.mxu0 %v1654
    %1829 = vmatpush1.bf16.msra.mxu0 %v1653
    %1830 = vmatprep.subr.bf16.mxu0 %v1647
    %1831 = vmatpush1.bf16.msra.mxu0 %v1646
    %1832 = vmatprep.subr.bf16.mxu0 %v1640
    %1833 = vmatpush1.bf16.msra.mxu0 %v1639
    %1834 = vmatprep.subr.bf16.mxu0 %v1633
    %1835 = vmatpush1.bf16.msra.mxu0 %v1632
    %1836 = vmatprep.subr.bf16.mxu0 %v1626
    %1837 = vmatpush1.bf16.msra.mxu0 %v1625
    %1838 = vmatprep.subr.bf16.mxu0 %v1619
    %1839 = vmatpush1.bf16.msra.mxu0 %v1618
    %1840 = vmatprep.subr.bf16.mxu0 %v1612
    %1841 = vmatpush1.bf16.msra.mxu0 %v1611
    %1842 = vmatprep.subr.bf16.mxu0 %v1605
    %1843 = vmatpush1.bf16.msra.mxu0 %v1604
    %1844 = vmatprep.subr.bf16.mxu0 %v1710
    %1845 = vmatpush2.bf16.msra.mxu0 %v1709
    %1846 = vmatprep.subr.bf16.mxu0 %v1703
    %1847 = vmatpush2.bf16.msra.mxu0 %v1702
    %1848 = vmatprep.subr.bf16.mxu0 %v1696
    %1849 = vmatpush2.bf16.msra.mxu0 %v1695
    %1850 = vmatprep.subr.bf16.mxu0 %v1689
    %1851 = vmatpush2.bf16.msra.mxu0 %v1688
    %1852 = vmatprep.subr.bf16.mxu0 %v1682
    %1853 = vmatpush2.bf16.msra.mxu0 %v1681
    %1854 = vmatprep.subr.bf16.mxu0 %v1675
    %1855 = vmatpush2.bf16.msra.mxu0 %v1674
    %1856 = vmatprep.subr.bf16.mxu0 %v1668
    %1857 = vmatpush2.bf16.msra.mxu0 %v1667
    %1858 = vmatprep.subr.bf16.mxu0 %v1661
    %1859 = vmatpush2.bf16.msra.mxu0 %v1660
    %1860 = vmatprep.mubr.bf16.mxu0 %v1086
    %1861 = vmatmul.mubr.bf16.gmra.mxu0 %v1085
    %v1862 = vpop.f32.mrf.mxu0
    %v1863 = vadd.f32 %v1220, %v1862
    %v1864 = vpop.f32.mrf.mxu0
    %v1865 = vadd.f32 %v1224, %v1864
    %v1866 = vpop.f32.mrf.mxu0
    %v1867 = vadd.f32 %v1220, %v1866
    %v1868 = vpop.f32.mrf.mxu0
    %v1869 = vadd.f32 %v1224, %v1868
    %1870 = vdwg.mxu0
    %1871 = vmatprep.subr.bf16.mxu0 %v1656
    %1872 = vmatpush1.bf16.msra.mxu0 %v1655
    %1873 = vmatprep.subr.bf16.mxu0 %v1649
    %1874 = vmatpush1.bf16.msra.mxu0 %v1648
    %1875 = vmatprep.subr.bf16.mxu0 %v1642
    %1876 = vmatpush1.bf16.msra.mxu0 %v1641
    %1877 = vmatprep.subr.bf16.mxu0 %v1635
    %1878 = vmatpush1.bf16.msra.mxu0 %v1634
    %1879 = vmatprep.subr.bf16.mxu0 %v1628
    %1880 = vmatpush1.bf16.msra.mxu0 %v1627
    %1881 = vmatprep.subr.bf16.mxu0 %v1621
    %1882 = vmatpush1.bf16.msra.mxu0 %v1620
    %1883 = vmatprep.subr.bf16.mxu0 %v1614
    %1884 = vmatpush1.bf16.msra.mxu0 %v1613
    %1885 = vmatprep.subr.bf16.mxu0 %v1607
    %1886 = vmatpush1.bf16.msra.mxu0 %v1606
    %1887 = vmatprep.subr.bf16.mxu0 %v1712
    %1888 = vmatpush2.bf16.msra.mxu0 %v1711
    %1889 = vmatprep.subr.bf16.mxu0 %v1705
    %1890 = vmatpush2.bf16.msra.mxu0 %v1704
    %1891 = vmatprep.subr.bf16.mxu0 %v1698
    %1892 = vmatpush2.bf16.msra.mxu0 %v1697
    %1893 = vmatprep.subr.bf16.mxu0 %v1691
    %1894 = vmatpush2.bf16.msra.mxu0 %v1690
    %1895 = vmatprep.subr.bf16.mxu0 %v1684
    %1896 = vmatpush2.bf16.msra.mxu0 %v1683
    %1897 = vmatprep.subr.bf16.mxu0 %v1677
    %1898 = vmatpush2.bf16.msra.mxu0 %v1676
    %1899 = vmatprep.subr.bf16.mxu0 %v1670
    %1900 = vmatpush2.bf16.msra.mxu0 %v1669
    %1901 = vmatprep.subr.bf16.mxu0 %v1663
    %1902 = vmatpush2.bf16.msra.mxu0 %v1662
    %1903 = vmatprep.mubr.bf16.mxu0 %v1086
    %1904 = vmatmul.mubr.bf16.gmra.mxu0 %v1085
    %v1905 = vpop.f32.mrf.mxu0
    %v1906 = vadd.f32 %v1228, %v1905
    %v1907 = vpop.f32.mrf.mxu0
    %v1908 = vadd.f32 %v1232, %v1907
    %v1909 = vpop.f32.mrf.mxu0
    %v1910 = vadd.f32 %v1228, %v1909
    %v1911 = vpop.f32.mrf.mxu0
    %v1912 = vadd.f32 %v1232, %v1911
    %1913 = vdwg.mxu0
    %1914 = vmatprep.subr.bf16.mxu0 %v1658
    %1915 = vmatpush1.bf16.msra.mxu0 %v1657
    %1916 = vmatprep.subr.bf16.mxu0 %v1651
    %1917 = vmatpush1.bf16.msra.mxu0 %v1650
    %1918 = vmatprep.subr.bf16.mxu0 %v1644
    %1919 = vmatpush1.bf16.msra.mxu0 %v1643
    %1920 = vmatprep.subr.bf16.mxu0 %v1637
    %1921 = vmatpush1.bf16.msra.mxu0 %v1636
    %1922 = vmatprep.subr.bf16.mxu0 %v1630
    %1923 = vmatpush1.bf16.msra.mxu0 %v1629
    %1924 = vmatprep.subr.bf16.mxu0 %v1623
    %1925 = vmatpush1.bf16.msra.mxu0 %v1622
    %1926 = vmatprep.subr.bf16.mxu0 %v1616
    %1927 = vmatpush1.bf16.msra.mxu0 %v1615
    %1928 = vmatprep.subr.bf16.mxu0 %v1609
    %1929 = vmatpush1.bf16.msra.mxu0 %v1608
    %1930 = vmatprep.subr.bf16.mxu0 %v1714
    %1931 = vmatpush2.bf16.msra.mxu0 %v1713
    %1932 = vmatprep.subr.bf16.mxu0 %v1707
    %1933 = vmatpush2.bf16.msra.mxu0 %v1706
    %1934 = vmatprep.subr.bf16.mxu0 %v1700
    %1935 = vmatpush2.bf16.msra.mxu0 %v1699
    %1936 = vmatprep.subr.bf16.mxu0 %v1693
    %1937 = vmatpush2.bf16.msra.mxu0 %v1692
    %1938 = vmatprep.subr.bf16.mxu0 %v1686
    %1939 = vmatpush2.bf16.msra.mxu0 %v1685
    %1940 = vmatprep.subr.bf16.mxu0 %v1679
    %1941 = vmatpush2.bf16.msra.mxu0 %v1678
    %1942 = vmatprep.subr.bf16.mxu0 %v1672
    %1943 = vmatpush2.bf16.msra.mxu0 %v1671
    %1944 = vmatprep.subr.bf16.mxu0 %v1665
    %1945 = vmatpush2.bf16.msra.mxu0 %v1664
    %1946 = vmatprep.mubr.bf16.mxu0 %v1086
    %1947 = vmatmul.mubr.bf16.gmra.mxu0 %v1085
    %v1948 = vpop.f32.mrf.mxu0
    %v1949 = vadd.f32 %v1236, %v1948
    %v1950 = vpop.f32.mrf.mxu0
    %v1951 = vadd.f32 %v1240, %v1950
    %v1952 = vpop.f32.mrf.mxu0
    %v1953 = vadd.f32 %v1236, %v1952
    %v1954 = vpop.f32.mrf.mxu0
    %v1955 = vadd.f32 %v1240, %v1954
    %1956 = vdwg.mxu0
    %1957 = vmatprep.subr.bf16.mxu0 0
    %1958 = vmatpush1.bf16.msra.mxu0 %v1659
    %1959 = vmatprep.subr.bf16.mxu0 0
    %1960 = vmatpush1.bf16.msra.mxu0 %v1652
    %1961 = vmatprep.subr.bf16.mxu0 0
    %1962 = vmatpush1.bf16.msra.mxu0 %v1645
    %1963 = vmatprep.subr.bf16.mxu0 0
    %1964 = vmatpush1.bf16.msra.mxu0 %v1638
    %1965 = vmatprep.subr.bf16.mxu0 0
    %1966 = vmatpush1.bf16.msra.mxu0 %v1631
    %1967 = vmatprep.subr.bf16.mxu0 0
    %1968 = vmatpush1.bf16.msra.mxu0 %v1624
    %1969 = vmatprep.subr.bf16.mxu0 0
    %1970 = vmatpush1.bf16.msra.mxu0 %v1617
    %1971 = vmatprep.subr.bf16.mxu0 0
    %1972 = vmatpush1.bf16.msra.mxu0 %v1610
    %1973 = vmatprep.subr.bf16.mxu0 0
    %1974 = vmatpush2.bf16.msra.mxu0 %v1715
    %1975 = vmatprep.subr.bf16.mxu0 0
    %1976 = vmatpush2.bf16.msra.mxu0 %v1708
    %1977 = vmatprep.subr.bf16.mxu0 0
    %1978 = vmatpush2.bf16.msra.mxu0 %v1701
    %1979 = vmatprep.subr.bf16.mxu0 0
    %1980 = vmatpush2.bf16.msra.mxu0 %v1694
    %1981 = vmatprep.subr.bf16.mxu0 0
    %1982 = vmatpush2.bf16.msra.mxu0 %v1687
    %1983 = vmatprep.subr.bf16.mxu0 0
    %1984 = vmatpush2.bf16.msra.mxu0 %v1680
    %1985 = vmatprep.subr.bf16.mxu0 0
    %1986 = vmatpush2.bf16.msra.mxu0 %v1673
    %1987 = vmatprep.subr.bf16.mxu0 0
    %1988 = vmatpush2.bf16.msra.mxu0 %v1666
    %1989 = vmatprep.mubr.bf16.mxu0 %v1086
    %1990 = vmatmul.mubr.bf16.gmra.mxu0 %v1085
    %v1991 = vpop.f32.mrf.mxu0
    %v1992 = vadd.f32 %v1244, %v1991
    %v1993 = vpop.f32.mrf.mxu0
    %v1994 = vpop.f32.mrf.mxu0
    %v1995 = vadd.f32 %v1244, %v1994
    %v1996 = vpop.f32.mrf.mxu0
    %1997 = vdwg.mxu0
    %v1998 = vxor.u32 %v1863, 2147483648
    %v1999 = vxor.u32 %v1865, 2147483648
    %v2000 = vxor.u32 %v1906, 2147483648
    %v2001 = vxor.u32 %v1908, 2147483648
    %v2002 = vxor.u32 %v1949, 2147483648
    %v2003 = vxor.u32 %v1951, 2147483648
    %v2004 = vxor.u32 %v1992, 2147483648
    %v2005 = vxor.u32 %v1867, 2147483648
    %v2006 = vxor.u32 %v1869, 2147483648
    %v2007 = vxor.u32 %v1910, 2147483648
    %v2008 = vxor.u32 %v1912, 2147483648
    %v2009 = vxor.u32 %v1953, 2147483648
    %v2010 = vxor.u32 %v1955, 2147483648
    %v2011 = vxor.u32 %v1995, 2147483648
    %v2012 = vmul.f32 %v1998, 1.442695
    %v2013 = vpow.pop %v2012
    %v2014 = vmul.f32 %v1999, 1.442695
    %v2015 = vpow.pop %v2014
    %v2016 = vmul.f32 %v2000, 1.442695
    %v2017 = vpow.pop %v2016
    %v2018 = vmul.f32 %v2001, 1.442695
    %v2019 = vpow.pop %v2018
    %v2020 = vmul.f32 %v2002, 1.442695
    %v2021 = vpow.pop %v2020
    %v2022 = vmul.f32 %v2003, 1.442695
    %v2023 = vpow.pop %v2022
    %v2024 = vmul.f32 %v2004, 1.442695
    %v2025 = vpow.pop %v2024
    %v2026 = vmul.f32 %v2005, 1.442695
    %v2027 = vpow.pop %v2026
    %v2028 = vmul.f32 %v2006, 1.442695
    %v2029 = vpow.pop %v2028
    %v2030 = vmul.f32 %v2007, 1.442695
    %v2031 = vpow.pop %v2030
    %v2032 = vmul.f32 %v2008, 1.442695
    %v2033 = vpow.pop %v2032
    %v2034 = vmul.f32 %v2009, 1.442695
    %v2035 = vpow.pop %v2034
    %v2036 = vmul.f32 %v2010, 1.442695
    %v2037 = vpow.pop %v2036
    %v2038 = vmul.f32 %v2011, 1.442695
    %v2039 = vpow.pop %v2038
    %v2040 = vadd.f32 %v2013, 1.0
    %v2041 = vadd.f32 %v2015, 1.0
    %v2042 = vadd.f32 %v2017, 1.0
    %v2043 = vadd.f32 %v2019, 1.0
    %v2044 = vadd.f32 %v2021, 1.0
    %v2045 = vadd.f32 %v2023, 1.0
    %v2046 = vadd.f32 %v2025, 1.0
    %v2047 = vadd.f32 %v2027, 1.0
    %v2048 = vadd.f32 %v2029, 1.0
    %v2049 = vadd.f32 %v2031, 1.0
    %v2050 = vadd.f32 %v2033, 1.0
    %v2051 = vadd.f32 %v2035, 1.0
    %v2052 = vadd.f32 %v2037, 1.0
    %v2053 = vadd.f32 %v2039, 1.0
    %v2054 = vrcp.pop %v2040
    %v2055 = vmul.f32 1.0, %v2054
    %v2056 = vrcp.pop %v2041
    %v2057 = vmul.f32 1.0, %v2056
    %v2058 = vrcp.pop %v2042
    %v2059 = vmul.f32 1.0, %v2058
    %v2060 = vrcp.pop %v2043
    %v2061 = vmul.f32 1.0, %v2060
    %v2062 = vrcp.pop %v2044
    %v2063 = vmul.f32 1.0, %v2062
    %v2064 = vrcp.pop %v2045
    %v2065 = vmul.f32 1.0, %v2064
    %v2066 = vrcp.pop %v2046
    %v2067 = vmul.f32 1.0, %v2066
    %v2068 = vrcp.pop %v2047
    %v2069 = vmul.f32 1.0, %v2068
    %v2070 = vrcp.pop %v2048
    %v2071 = vmul.f32 1.0, %v2070
    %v2072 = vrcp.pop %v2049
    %v2073 = vmul.f32 1.0, %v2072
    %v2074 = vrcp.pop %v2050
    %v2075 = vmul.f32 1.0, %v2074
    %v2076 = vrcp.pop %v2051
    %v2077 = vmul.f32 1.0, %v2076
    %v2078 = vrcp.pop %v2052
    %v2079 = vmul.f32 1.0, %v2078
    %v2080 = vrcp.pop %v2053
    %v2081 = vmul.f32 1.0, %v2080
    %2082 = vst [vmem:[#allocation2] sm:$0xff] %v2055
    %2083 = vst [vmem:[#allocation2 + $0x8] sm:$0xff] %v2057
    %2084 = vst [vmem:[#allocation2 + $0x10] sm:$0xff] %v2059
    %2085 = vst [vmem:[#allocation2 + $0x18] sm:$0xff] %v2061
    %2086 = vst [vmem:[#allocation2 + $0x20] sm:$0xff] %v2063
    %2087 = vst [vmem:[#allocation2 + $0x28] sm:$0xff] %v2065
    %2088 = vst.msk [vmem:[#allocation2 + $0x30] sm:$0xff] %vm683, %v2067
    %2089 = vst [vmem:[#allocation2 + $0x38] sm:$0xff] %v2069
    %2090 = vst [vmem:[#allocation2 + $0x40] sm:$0xff] %v2071
    %2091 = vst [vmem:[#allocation2 + $0x48] sm:$0xff] %v2073
    %2092 = vst [vmem:[#allocation2 + $0x50] sm:$0xff] %v2075
    %2093 = vst [vmem:[#allocation2 + $0x58] sm:$0xff] %v2077
    %2094 = vst [vmem:[#allocation2 + $0x60] sm:$0xff] %v2079
    %2095 = vst.msk [vmem:[#allocation2 + $0x68] sm:$0xff] %vm683, %v2081
    %2096 = vst [vmem:[#allocation4] sm:$0xff] %v969
    %2097 = vst [vmem:[#allocation4 + $0x8] sm:$0xff] %v974
    // Predicated region
    $region42: #{tpu_custom_call.1} parent=1 // pred_check
      _
    $region43: #{tpu_custom_call.1} parent=1 // pred_check_branch
      %2099 = sbr.rel (0) target = $region45
    $region44: #{tpu_custom_call.1} parent=1 // pred_region
      %s2101 = ssub.s32 1792, 1792
      %2102 = vsyncadd [#allocation3], %s2101
      %s2103 = sshll.u32 [#allocation2], 4
      %s2104 = int_to_ptr.vmem [resolvable:$true] %s2103
      %2109 = dma.vmem_to_hbm [thread:$0]  %s2104, 1792, %s10, [#allocation3], 896, 896, 56
    $region45: #{tpu_custom_call.1} parent=1 // pred_fallthru
      _
    // Predicated region
    $region46: #{tpu_custom_call.1} parent=1 // pred_check
      _
    $region47: #{tpu_custom_call.1} parent=1 // pred_check_branch
      %2111 = sbr.rel (0) target = $region49
    $region48: #{tpu_custom_call.1} parent=1 // pred_region
      %s2113 = ssub.s32 256, 256
      %2114 = vsyncadd [#allocation5], %s2113
      %s2115 = sshll.u32 [#allocation4], 4
      %s2116 = int_to_ptr.vmem [resolvable:$true] %s2115
      %2121 = dma.vmem_to_hbm [thread:$0]  %s2116, 256, %s11, [#allocation5], 128, 128, 8
    $region49: #{tpu_custom_call.1} parent=1 // pred_fallthru
      _
    // Predicated region
    $region50: #{tpu_custom_call.1} parent=1 // pred_check
      _
    $region51: #{tpu_custom_call.1} parent=1 // pred_check_branch
      %2123 = sbr.rel (0) target = $region53
    $region52: #{tpu_custom_call.1} parent=1 // pred_region
      %2124 = dma.done [#allocation3], 1792
    $region53: #{tpu_custom_call.1} parent=1 // pred_fallthru
      _
    // Predicated region
    $region54: #{tpu_custom_call.1} parent=1 // pred_check
      _
    $region55: #{tpu_custom_call.1} parent=1 // pred_check_branch
      %2126 = sbr.rel (0) target = $region57
    $region56: #{tpu_custom_call.1} parent=1 // pred_region
      %2127 = dma.done [#allocation5], 256
    $region57: #{tpu_custom_call.1} parent=1 // pred_fallthru
      _
    %2128 = vsyncpa [#allocation3], 1
    %2129 = vsyncpa [#allocation5], 1

</llo_original>
